<compile_context>
chip_gen: v7x
topology: tpu7x:2x2x1
jax: 0.10.0
libtpu: 0.0.40
codegen_flags: <defaults>
</compile_context>

<pallas_src>
import functools

import jax
import jax.numpy as jnp
from jax.experimental import pallas as pl
from jax.experimental.pallas import tpu as pltpu

IN_DIM = 28            # logical input / output feature dim (residual requires out == 28)
HIDDEN = 300           # H in the PyTorch module
FEAT_PAD = 128         # lane-aligned padded I/O feature dim
HIDDEN_PAD = 384       # lane-aligned padded hidden dim (sweep 512 on 2x256-MXU chips)
MAX_BATCH_TILE = 1024  # rows per grid step; ~10 MB VMEM at this tile
SPLIT_THRESHOLD = 512  # only split the batch across grid steps when padded_B >= this


def _round_up(x, m):
    return ((x + m - 1) // m) * m


def _choose_batch_tile(batch, max_tile=MAX_BATCH_TILE, split_threshold=SPLIT_THRESHOLD):
    """Sublane-aligned batch tile.

    Small/medium batches get a single fat tile (1-TC chips gain nothing from splitting,
    and splitting duplicates the weight DMA per core on v7x).  Batches >= split_threshold
    are split into >=2 tiles so v7x's two TensorCores both get >=256-row work; the tile is
    capped at max_tile so very large batches pipeline over multiple grid steps.
    """
    b8 = _round_up(max(batch, 1), 8)
    if b8 > max_tile:
        return max_tile
    if b8 >= split_threshold:
        return max(_round_up(b8 // 2, 8), 8)
    return b8


def _mlp_kernel(x_ref,
                w1_ref, b1_ref, w2_ref, b2_ref, w3_ref, b3_ref,
                w4_ref, b4_ref, w5_ref, b5_ref, w6_ref, b6_ref,
                o_ref):
    """Whole 6-layer MLP + residual for one batch tile, fully in VMEM."""
    x = x_ref[...]  # (tile, FEAT_PAD) f32 — kept f32 for the residual add

    def layer(h, w_ref, b_ref, relu):
        # Cast the LHS to the weight dtype (bf16 by default) for the native MXU path;
        # accumulate in f32, add the f32 bias broadcast over the batch (sublane) axis.
        y = jnp.dot(h.astype(w_ref.dtype), w_ref[...],
                    preferred_element_type=jnp.float32) + b_ref[...]
        return jnp.maximum(y, 0.0) if relu else y

    h = layer(x, w1_ref, b1_ref, True)
    h = layer(h, w2_ref, b2_ref, True)
    h = layer(h, w3_ref, b3_ref, True)
    h = layer(h, w4_ref, b4_ref, True)
    h = layer(h, w5_ref, b5_ref, True)
    y = layer(h, w6_ref, b6_ref, False)

    # residual: output = model(input) + input (padded columns of both are zero)
    o_ref[...] = (y + x).astype(o_ref.dtype)


def prepare_params(params, *, weight_dtype=jnp.bfloat16,
                   hidden_pad=HIDDEN_PAD, feat_pad=FEAT_PAD):
    """One-time weight prep.

    Casts weights to `weight_dtype` (biases stay f32) and zero-pads:
      * hidden dim HIDDEN -> hidden_pad (lane-aligned 128-multiple)
      * I/O feature dim IN_DIM -> feat_pad (W1 rows, W6 cols, b6)
    Zero padding is exact: padded hidden columns stay 0 through bias + ReLU and padded
    output columns stay 0 through the residual, so the [:, :28] slice is unchanged.
    """
    n = len(params)
    prepared = []
    for idx, (w, b) in enumerate(params):
        w = jnp.asarray(w)
        b = jnp.reshape(jnp.asarray(b), (1, -1))
        fin, fout = w.shape
        new_fin = feat_pad if idx == 0 else hidden_pad
        new_fout = feat_pad if idx == n - 1 else hidden_pad
        w_p = jnp.zeros((new_fin, new_fout), weight_dtype).at[:fin, :fout].set(
            w.astype(weight_dtype))
        b_p = jnp.zeros((1, new_fout), jnp.float32).at[:, :fout].set(
            b.astype(jnp.float32))
        prepared.append((w_p, b_p))
    return prepared


@functools.partial(jax.jit, static_argnames=("max_batch_tile",))
def another_dn_forward(x, prepared_params, *, max_batch_tile=MAX_BATCH_TILE):
    """x: (B, 28) float32. prepared_params: list of (W, b) from prepare_params."""
    B, F = x.shape
    assert F == IN_DIM, f"expected feature dim {IN_DIM}, got {F}"
    feat_pad = prepared_params[0][0].shape[0]

    tile = _choose_batch_tile(B, max_batch_tile)
    padded_B = _round_up(B, tile)

    # Zero-pad batch (to a tile multiple) and feature dim (28 -> 128, lane-dense I/O).
    x_in = jnp.zeros((padded_B, feat_pad), x.dtype).at[:B, :IN_DIM].set(x)

    flat_params = []
    in_specs = [pl.BlockSpec((tile, feat_pad), lambda i: (i, 0))]
    flops = 0
    bytes_accessed = 2 * padded_B * feat_pad * jnp.dtype(x.dtype).itemsize  # x read + out write
    for (w, b) in prepared_params:
        flat_params.append(w)
        flat_params.append(b)
        # Full-array blocks with constant index_map -> weights stay VMEM-resident and
        # are not re-DMA'd across grid steps.
        in_specs.append(pl.BlockSpec(w.shape, lambda i: (0, 0)))
        in_specs.append(pl.BlockSpec(b.shape, lambda i: (0, 0)))
        flops += 2 * padded_B * w.shape[0] * w.shape[1]
        # Weights are fetched once (per core), not per grid step.
        bytes_accessed += (w.size * jnp.dtype(w.dtype).itemsize
                           + b.size * jnp.dtype(b.dtype).itemsize)

    grid = (padded_B // tile,)

    out = pl.pallas_call(
        _mlp_kernel,
        out_shape=jax.ShapeDtypeStruct((padded_B, feat_pad), x.dtype),
        grid_spec=pltpu.PrefetchScalarGridSpec(
            num_scalar_prefetch=0,
            grid=grid,
            in_specs=in_specs,
            out_specs=pl.BlockSpec((tile, feat_pad), lambda i: (i, 0)),
        ),
        compiler_params=pltpu.CompilerParams(
            dimension_semantics=("parallel",),
            vmem_limit_bytes=32 * 1024 * 1024),
        cost_estimate=pl.CostEstimate(
            flops=int(flops),
            transcendentals=0,
            bytes_accessed=int(bytes_accessed)),
    )(x_in, *flat_params)

    return out[:B, :IN_DIM]


def init_params(key, H=HIDDEN, out=IN_DIM):
    """Deterministic init matching torch.nn.Linear default (U[-1/sqrt(fan_in), +])."""
    dims = [(IN_DIM, H), (H, H), (H, H), (H, H), (H, H), (H, out)]
    params = []
    for (fan_in, fan_out) in dims:
        key, kw, kb = jax.random.split(key, 3)
        bound = 1.0 / jnp.sqrt(fan_in)
        w = jax.random.uniform(kw, (fan_in, fan_out), jnp.float32, -bound, bound)
        b = jax.random.uniform(kb, (1, fan_out), jnp.float32, -bound, bound)
        params.append((w, b))
    return params


def reference_forward(x, params, weight_dtype=jnp.bfloat16):
    """Pure-JAX reference mirroring the kernel numerics (bf16 MXU inputs, f32 accum)."""
    h = x
    n = len(params)
    for i, (w, b) in enumerate(params):
        h = jnp.dot(h.astype(weight_dtype), w.astype(weight_dtype),
                    preferred_element_type=jnp.float32) + b.astype(jnp.float32)
        if i < n - 1:
            h = jnp.maximum(h, 0.0)
    return h + x


def reference_forward_f32(x, params):
    """Strict f32 reference (matches the PyTorch module's default dtype)."""
    h = x
    n = len(params)
    for i, (w, b) in enumerate(params):
        h = jnp.dot(h, w, preferred_element_type=jnp.float32) + b
        if i < n - 1:
            h = jnp.maximum(h, 0.0)
    return h + x


if __name__ == "__main__":
    key = jax.random.PRNGKey(0)
    key, kx = jax.random.split(key)

    B = 16  # small demo batch; the wrapper pads/tiles arbitrary B
    x = jax.random.normal(kx, (B, IN_DIM), jnp.float32)
    params = init_params(key)

    # Default path: bf16 weights, hidden dim padded 300 -> 384, I/O padded 28 -> 128.
    prep = prepare_params(params)
    out = jax.block_until_ready(another_dn_forward(x, prep))

    # Optional f32-weight path (strict parity with an f32 nn.Linear stack).
    prep_f32 = prepare_params(params, weight_dtype=jnp.float32)
    out_f32 = jax.block_until_ready(another_dn_forward(x, prep_f32))

    ref_bf16 = reference_forward(x, params)
    ref_f32 = reference_forward_f32(x, params)

    assert out.shape == (B, IN_DIM)
    assert out_f32.shape == (B, IN_DIM)
    assert jnp.allclose(out, ref_bf16, atol=5e-3, rtol=5e-3), "mismatch vs bf16 reference"
    assert jnp.allclose(out_f32, ref_f32, atol=1e-4, rtol=1e-4), "mismatch vs f32 reference"
    assert jnp.allclose(out, ref_f32, atol=3e-2, rtol=3e-2), "bf16 path drifted from f32 module"

    print("KERNEL_OK")
</pallas_src>

<mosaic_0001>
module attributes {stable_mosaic.version = 11 : i64} {
  func.func @_mlp_kernel(%arg0: i32, %arg1: memref<16x128xf32, #tpu.memory_space<vmem>>, %arg2: memref<128x384xbf16, #tpu.memory_space<vmem>>, %arg3: memref<1x384xf32, #tpu.memory_space<vmem>>, %arg4: memref<384x384xbf16, #tpu.memory_space<vmem>>, %arg5: memref<1x384xf32, #tpu.memory_space<vmem>>, %arg6: memref<384x384xbf16, #tpu.memory_space<vmem>>, %arg7: memref<1x384xf32, #tpu.memory_space<vmem>>, %arg8: memref<384x384xbf16, #tpu.memory_space<vmem>>, %arg9: memref<1x384xf32, #tpu.memory_space<vmem>>, %arg10: memref<384x384xbf16, #tpu.memory_space<vmem>>, %arg11: memref<1x384xf32, #tpu.memory_space<vmem>>, %arg12: memref<384x128xbf16, #tpu.memory_space<vmem>>, %arg13: memref<1x128xf32, #tpu.memory_space<vmem>>, %arg14: memref<16x128xf32, #tpu.memory_space<vmem>>) attributes {dimension_semantics = [#tpu.dimension_semantics<parallel>], iteration_bounds = array<i64: 1>, scalar_prefetch = 0 : i64, scratch_operands = 0 : i64, tpu.core_type = #tpu.core_type<tc>, window_params = [{transform_indices = @transform_0, window_bounds = array<i64: 16, 128>}, {pipeline_mode = #tpu.pipeline_mode<synchronous>, transform_indices = @transform_1, window_bounds = array<i64: 128, 384>}, {pipeline_mode = #tpu.pipeline_mode<synchronous>, transform_indices = @transform_2, window_bounds = array<i64: 1, 384>}, {pipeline_mode = #tpu.pipeline_mode<synchronous>, transform_indices = @transform_3, window_bounds = array<i64: 384, 384>}, {pipeline_mode = #tpu.pipeline_mode<synchronous>, transform_indices = @transform_4, window_bounds = array<i64: 1, 384>}, {pipeline_mode = #tpu.pipeline_mode<synchronous>, transform_indices = @transform_5, window_bounds = array<i64: 384, 384>}, {pipeline_mode = #tpu.pipeline_mode<synchronous>, transform_indices = @transform_6, window_bounds = array<i64: 1, 384>}, {pipeline_mode = #tpu.pipeline_mode<synchronous>, transform_indices = @transform_7, window_bounds = array<i64: 384, 384>}, {pipeline_mode = #tpu.pipeline_mode<synchronous>, transform_indices = @transform_8, window_bounds = array<i64: 1, 384>}, {pipeline_mode = #tpu.pipeline_mode<synchronous>, transform_indices = @transform_9, window_bounds = array<i64: 384, 384>}, {pipeline_mode = #tpu.pipeline_mode<synchronous>, transform_indices = @transform_10, window_bounds = array<i64: 1, 384>}, {pipeline_mode = #tpu.pipeline_mode<synchronous>, transform_indices = @transform_11, window_bounds = array<i64: 384, 128>}, {pipeline_mode = #tpu.pipeline_mode<synchronous>, transform_indices = @transform_12, window_bounds = array<i64: 1, 128>}, {transform_indices = @transform_13, window_bounds = array<i64: 16, 128>}]} {
    %c0 = arith.constant 0 : index
    %c0_0 = arith.constant 0 : index
    %0 = vector.load %arg1[%c0, %c0_0] : memref<16x128xf32, #tpu.memory_space<vmem>>, vector<16x128xf32>
    %1 = arith.truncf %0 : vector<16x128xf32> to vector<16x128xbf16>
    %c0_1 = arith.constant 0 : index
    %c0_2 = arith.constant 0 : index
    %2 = vector.load %arg2[%c0_1, %c0_2] : memref<128x384xbf16, #tpu.memory_space<vmem>>, vector<128x384xbf16>
    %cst = arith.constant dense<0.000000e+00> : vector<16x384xf32>
    %3 = tpu.matmul %1, %2, %cst {dimension_numbers = #tpu.dot_dimension_numbers<[1], [0], [0], [1], [0, 0, 1, 1], [], []>} : vector<16x128xbf16>, vector<128x384xbf16>, vector<16x384xf32> -> vector<16x384xf32>
    %c0_3 = arith.constant 0 : index
    %c0_4 = arith.constant 0 : index
    %4 = vector.load %arg3[%c0_3, %c0_4] : memref<1x384xf32, #tpu.memory_space<vmem>>, vector<1x384xf32>
    %5 = vector.broadcast %4 : vector<1x384xf32> to vector<16x384xf32>
    %6 = arith.addf %3, %5 : vector<16x384xf32>
    %cst_5 = arith.constant 0.000000e+00 : f32
    %7 = vector.broadcast %cst_5 : f32 to vector<16x384xf32>
    %8 = arith.maximumf %6, %7 : vector<16x384xf32>
    %9 = arith.truncf %8 : vector<16x384xf32> to vector<16x384xbf16>
    %c0_6 = arith.constant 0 : index
    %c0_7 = arith.constant 0 : index
    %10 = vector.load %arg4[%c0_6, %c0_7] : memref<384x384xbf16, #tpu.memory_space<vmem>>, vector<384x384xbf16>
    %cst_8 = arith.constant dense<0.000000e+00> : vector<16x384xf32>
    %11 = tpu.matmul %9, %10, %cst_8 {dimension_numbers = #tpu.dot_dimension_numbers<[1], [0], [0], [1], [0, 0, 1, 1], [], []>} : vector<16x384xbf16>, vector<384x384xbf16>, vector<16x384xf32> -> vector<16x384xf32>
    %c0_9 = arith.constant 0 : index
    %c0_10 = arith.constant 0 : index
    %12 = vector.load %arg5[%c0_9, %c0_10] : memref<1x384xf32, #tpu.memory_space<vmem>>, vector<1x384xf32>
    %13 = vector.broadcast %12 : vector<1x384xf32> to vector<16x384xf32>
    %14 = arith.addf %11, %13 : vector<16x384xf32>
    %cst_11 = arith.constant 0.000000e+00 : f32
    %15 = vector.broadcast %cst_11 : f32 to vector<16x384xf32>
    %16 = arith.maximumf %14, %15 : vector<16x384xf32>
    %17 = arith.truncf %16 : vector<16x384xf32> to vector<16x384xbf16>
    %c0_12 = arith.constant 0 : index
    %c0_13 = arith.constant 0 : index
    %18 = vector.load %arg6[%c0_12, %c0_13] : memref<384x384xbf16, #tpu.memory_space<vmem>>, vector<384x384xbf16>
    %cst_14 = arith.constant dense<0.000000e+00> : vector<16x384xf32>
    %19 = tpu.matmul %17, %18, %cst_14 {dimension_numbers = #tpu.dot_dimension_numbers<[1], [0], [0], [1], [0, 0, 1, 1], [], []>} : vector<16x384xbf16>, vector<384x384xbf16>, vector<16x384xf32> -> vector<16x384xf32>
    %c0_15 = arith.constant 0 : index
    %c0_16 = arith.constant 0 : index
    %20 = vector.load %arg7[%c0_15, %c0_16] : memref<1x384xf32, #tpu.memory_space<vmem>>, vector<1x384xf32>
    %21 = vector.broadcast %20 : vector<1x384xf32> to vector<16x384xf32>
    %22 = arith.addf %19, %21 : vector<16x384xf32>
    %cst_17 = arith.constant 0.000000e+00 : f32
    %23 = vector.broadcast %cst_17 : f32 to vector<16x384xf32>
    %24 = arith.maximumf %22, %23 : vector<16x384xf32>
    %25 = arith.truncf %24 : vector<16x384xf32> to vector<16x384xbf16>
    %c0_18 = arith.constant 0 : index
    %c0_19 = arith.constant 0 : index
    %26 = vector.load %arg8[%c0_18, %c0_19] : memref<384x384xbf16, #tpu.memory_space<vmem>>, vector<384x384xbf16>
    %cst_20 = arith.constant dense<0.000000e+00> : vector<16x384xf32>
    %27 = tpu.matmul %25, %26, %cst_20 {dimension_numbers = #tpu.dot_dimension_numbers<[1], [0], [0], [1], [0, 0, 1, 1], [], []>} : vector<16x384xbf16>, vector<384x384xbf16>, vector<16x384xf32> -> vector<16x384xf32>
    %c0_21 = arith.constant 0 : index
    %c0_22 = arith.constant 0 : index
    %28 = vector.load %arg9[%c0_21, %c0_22] : memref<1x384xf32, #tpu.memory_space<vmem>>, vector<1x384xf32>
    %29 = vector.broadcast %28 : vector<1x384xf32> to vector<16x384xf32>
    %30 = arith.addf %27, %29 : vector<16x384xf32>
    %cst_23 = arith.constant 0.000000e+00 : f32
    %31 = vector.broadcast %cst_23 : f32 to vector<16x384xf32>
    %32 = arith.maximumf %30, %31 : vector<16x384xf32>
    %33 = arith.truncf %32 : vector<16x384xf32> to vector<16x384xbf16>
    %c0_24 = arith.constant 0 : index
    %c0_25 = arith.constant 0 : index
    %34 = vector.load %arg10[%c0_24, %c0_25] : memref<384x384xbf16, #tpu.memory_space<vmem>>, vector<384x384xbf16>
    %cst_26 = arith.constant dense<0.000000e+00> : vector<16x384xf32>
    %35 = tpu.matmul %33, %34, %cst_26 {dimension_numbers = #tpu.dot_dimension_numbers<[1], [0], [0], [1], [0, 0, 1, 1], [], []>} : vector<16x384xbf16>, vector<384x384xbf16>, vector<16x384xf32> -> vector<16x384xf32>
    %c0_27 = arith.constant 0 : index
    %c0_28 = arith.constant 0 : index
    %36 = vector.load %arg11[%c0_27, %c0_28] : memref<1x384xf32, #tpu.memory_space<vmem>>, vector<1x384xf32>
    %37 = vector.broadcast %36 : vector<1x384xf32> to vector<16x384xf32>
    %38 = arith.addf %35, %37 : vector<16x384xf32>
    %cst_29 = arith.constant 0.000000e+00 : f32
    %39 = vector.broadcast %cst_29 : f32 to vector<16x384xf32>
    %40 = arith.maximumf %38, %39 : vector<16x384xf32>
    %41 = arith.truncf %40 : vector<16x384xf32> to vector<16x384xbf16>
    %c0_30 = arith.constant 0 : index
    %c0_31 = arith.constant 0 : index
    %42 = vector.load %arg12[%c0_30, %c0_31] : memref<384x128xbf16, #tpu.memory_space<vmem>>, vector<384x128xbf16>
    %cst_32 = arith.constant dense<0.000000e+00> : vector<16x128xf32>
    %43 = tpu.matmul %41, %42, %cst_32 {dimension_numbers = #tpu.dot_dimension_numbers<[1], [0], [0], [1], [0, 0, 1, 1], [], []>} : vector<16x384xbf16>, vector<384x128xbf16>, vector<16x128xf32> -> vector<16x128xf32>
    %c0_33 = arith.constant 0 : index
    %c0_34 = arith.constant 0 : index
    %44 = vector.load %arg13[%c0_33, %c0_34] : memref<1x128xf32, #tpu.memory_space<vmem>>, vector<1x128xf32>
    %45 = vector.broadcast %44 : vector<1x128xf32> to vector<16x128xf32>
    %46 = arith.addf %43, %45 : vector<16x128xf32>
    %47 = arith.addf %46, %0 : vector<16x128xf32>
    %c0_35 = arith.constant 0 : index
    %c0_36 = arith.constant 0 : index
    %48 = vector.load %arg14[%c0_35, %c0_36] : memref<16x128xf32, #tpu.memory_space<vmem>>, vector<16x128xf32>
    tpu.vector_store %arg14[%c0_35, %c0_36], %47 {strides = array<i32>} : memref<16x128xf32, #tpu.memory_space<vmem>>, vector<16x128xf32>,
    return
  }
  func.func @transform_0(%arg0: i32) -> (i32, i32) {
    %c0_i32 = arith.constant 0 : i32
    %c0_i32_0 = arith.constant 0 : i32
    return %arg0, %c0_i32 : i32, i32
  }
  func.func @transform_1(%arg0: i32) -> (i32, i32) {
    %c0_i32 = arith.constant 0 : i32
    %c0_i32_0 = arith.constant 0 : i32
    %c0_i32_1 = arith.constant 0 : i32
    return %c0_i32, %c0_i32_0 : i32, i32
  }
  func.func @transform_2(%arg0: i32) -> (i32, i32) {
    %c0_i32 = arith.constant 0 : i32
    %c0_i32_0 = arith.constant 0 : i32
    %c0_i32_1 = arith.constant 0 : i32
    return %c0_i32, %c0_i32_0 : i32, i32
  }
  func.func @transform_3(%arg0: i32) -> (i32, i32) {
    %c0_i32 = arith.constant 0 : i32
    %c0_i32_0 = arith.constant 0 : i32
    %c0_i32_1 = arith.constant 0 : i32
    return %c0_i32, %c0_i32_0 : i32, i32
  }
  func.func @transform_4(%arg0: i32) -> (i32, i32) {
    %c0_i32 = arith.constant 0 : i32
    %c0_i32_0 = arith.constant 0 : i32
    %c0_i32_1 = arith.constant 0 : i32
    return %c0_i32, %c0_i32_0 : i32, i32
  }
  func.func @transform_5(%arg0: i32) -> (i32, i32) {
    %c0_i32 = arith.constant 0 : i32
    %c0_i32_0 = arith.constant 0 : i32
    %c0_i32_1 = arith.constant 0 : i32
    return %c0_i32, %c0_i32_0 : i32, i32
  }
  func.func @transform_6(%arg0: i32) -> (i32, i32) {
    %c0_i32 = arith.constant 0 : i32
    %c0_i32_0 = arith.constant 0 : i32
    %c0_i32_1 = arith.constant 0 : i32
    return %c0_i32, %c0_i32_0 : i32, i32
  }
  func.func @transform_7(%arg0: i32) -> (i32, i32) {
    %c0_i32 = arith.constant 0 : i32
    %c0_i32_0 = arith.constant 0 : i32
    %c0_i32_1 = arith.constant 0 : i32
    return %c0_i32, %c0_i32_0 : i32, i32
  }
  func.func @transform_8(%arg0: i32) -> (i32, i32) {
    %c0_i32 = arith.constant 0 : i32
    %c0_i32_0 = arith.constant 0 : i32
    %c0_i32_1 = arith.constant 0 : i32
    return %c0_i32, %c0_i32_0 : i32, i32
  }
  func.func @transform_9(%arg0: i32) -> (i32, i32) {
    %c0_i32 = arith.constant 0 : i32
    %c0_i32_0 = arith.constant 0 : i32
    %c0_i32_1 = arith.constant 0 : i32
    return %c0_i32, %c0_i32_0 : i32, i32
  }
  func.func @transform_10(%arg0: i32) -> (i32, i32) {
    %c0_i32 = arith.constant 0 : i32
    %c0_i32_0 = arith.constant 0 : i32
    %c0_i32_1 = arith.constant 0 : i32
    return %c0_i32, %c0_i32_0 : i32, i32
  }
  func.func @transform_11(%arg0: i32) -> (i32, i32) {
    %c0_i32 = arith.constant 0 : i32
    %c0_i32_0 = arith.constant 0 : i32
    %c0_i32_1 = arith.constant 0 : i32
    return %c0_i32, %c0_i32_0 : i32, i32
  }
  func.func @transform_12(%arg0: i32) -> (i32, i32) {
    %c0_i32 = arith.constant 0 : i32
    %c0_i32_0 = arith.constant 0 : i32
    %c0_i32_1 = arith.constant 0 : i32
    return %c0_i32, %c0_i32_0 : i32, i32
  }
  func.func @transform_13(%arg0: i32) -> (i32, i32) {
    %c0_i32 = arith.constant 0 : i32
    %c0_i32_0 = arith.constant 0 : i32
    return %arg0, %c0_i32 : i32, i32
  }
}

</mosaic_0001>

<llo_original>
// kernel: another_dn_forward.1
$region0: #{another_dn_forward.1}
  #allocation0 [shape = 'u32[]', space=smem, size = 0x4, offset = 0x4, fixed_abs, tag = 'smem constant byte address 0x4 - core index']
  #allocation1 [shape = 'u32[144,128]{1,0:T(1,128)}', space=vmem, size = 0x12000, scoped, tag = 'internal scratch']
  %s0 = inlined_call_operand.vmem [shape: f32[16,128], index: 0, kind: input, shape index: {}]
  %s1 = inlined_call_operand.hbm [shape: bf16[128,384], index: 1, kind: input, shape index: {}]
  %s2 = inlined_call_operand.vmem [shape: f32[1,384], index: 2, kind: input, shape index: {}]
  %s3 = inlined_call_operand.hbm [shape: bf16[384,384], index: 3, kind: input, shape index: {}]
  %s4 = inlined_call_operand.vmem [shape: f32[1,384], index: 4, kind: input, shape index: {}]
  %s5 = inlined_call_operand.hbm [shape: bf16[384,384], index: 5, kind: input, shape index: {}]
  %s6 = inlined_call_operand.vmem [shape: f32[1,384], index: 6, kind: input, shape index: {}]
  %s7 = inlined_call_operand.hbm [shape: bf16[384,384], index: 7, kind: input, shape index: {}]
  %s8 = inlined_call_operand.vmem [shape: f32[1,384], index: 8, kind: input, shape index: {}]
  %s9 = inlined_call_operand.hbm [shape: bf16[384,384], index: 9, kind: input, shape index: {}]
  %s10 = inlined_call_operand.vmem [shape: f32[1,384], index: 10, kind: input, shape index: {}]
  %s11 = inlined_call_operand.hbm [shape: bf16[384,128], index: 11, kind: input, shape index: {}]
  %s12 = inlined_call_operand.vmem [shape: f32[1,128], index: 12, kind: input, shape index: {}]
  %s13 = inlined_call_operand.hbm [shape: f32[16,128], index: 13, kind: output, shape index: {}]
  %s14 = sld [smem:[#allocation0]]
  $region86: #{another_dn_forward.1} parent=0
    _
  %s16 = ssub.s32 1, %s14
  %s17 = scalar_select 0, %s16, %s14
  $region1: #{another_dn_forward.1} parent=0
    #allocation2 [shape = 'u8[98304]{0}', space=vmem, size = 0x18000, scoped, tag = 'input window, operand 1, single buffered']
    #allocation3 [shape = 's32[1]{0}', space=sflag, size = 0x4, scoped, tag = 'scoped memory for another_dn_forward.1']
    #allocation4 [shape = 's32[1]{0}', space=sflag, size = 0x4, scoped, tag = 'scoped memory for another_dn_forward.1']
    #allocation5 [shape = 'u8[294912]{0}', space=vmem, size = 0x48000, scoped, tag = 'input window, operand 3, single buffered']
    #allocation6 [shape = 's32[1]{0}', space=sflag, size = 0x4, scoped, tag = 'scoped memory for another_dn_forward.1']
    #allocation7 [shape = 'u8[294912]{0}', space=vmem, size = 0x48000, scoped, tag = 'input window, operand 5, single buffered']
    #allocation8 [shape = 'u8[294912]{0}', space=vmem, size = 0x48000, scoped, tag = 'input window, operand 7, single buffered']
    #allocation9 [shape = 's32[1]{0}', space=sflag, size = 0x4, scoped, tag = 'scoped memory for another_dn_forward.1']
    #allocation10 [shape = 'u8[294912]{0}', space=vmem, size = 0x48000, scoped, tag = 'input window, operand 9, single buffered']
    #allocation11 [shape = 'u8[98304]{0}', space=vmem, size = 0x18000, scoped, tag = 'input window, operand 11, single buffered']
    #allocation12 [shape = 's32[1]{0}', space=sflag, size = 0x4, scoped, tag = 'scoped memory for another_dn_forward.1']
    #allocation13 [shape = 'u8[8192]{0}', space=vmem, size = 0x2000, scoped, tag = 'output window, operand 0, single buffered']
    %18 = vsyncpa [#allocation3], 0
    %19 = vsyncpa [#allocation6], 0
    %20 = vsyncpa [#allocation9], 0
    %21 = vsyncpa [#allocation12], 0
    %22 = vsyncpa [#allocation4], 0
    // Predicated region
    $region2: #{another_dn_forward.1} parent=1 // pred_check
      _
    $region3: #{another_dn_forward.1} parent=1 // pred_check_branch
      %24 = sbr.rel (0) target = $region5
    $region4: #{another_dn_forward.1} parent=1 // pred_region
      _
    $region5: #{another_dn_forward.1} parent=1 // pred_fallthru
      _
    // Predicated region
    $region6: #{another_dn_forward.1} parent=1 // pred_check
      _
    $region7: #{another_dn_forward.1} parent=1 // pred_check_branch
      %26 = sbr.rel (0) target = $region9
    $region8: #{another_dn_forward.1} parent=1 // pred_region
      %s28 = ssub.s32 3072, 3072
      %29 = vsyncadd [#allocation3], %s28
      %s30 = sshll.u32 [#allocation2], 4
      %s31 = int_to_ptr.vmem [resolvable:$true] %s30
      %36 = dma.hbm_to_vmem [thread:$0]  %s1, 3072, %s31, [#allocation3], 192, 192, 12
    $region9: #{another_dn_forward.1} parent=1 // pred_fallthru
      _
    // Predicated region
    $region10: #{another_dn_forward.1} parent=1 // pred_check
      _
    $region11: #{another_dn_forward.1} parent=1 // pred_check_branch
      %38 = sbr.rel (0) target = $region13
    $region12: #{another_dn_forward.1} parent=1 // pred_region
      _
    $region13: #{another_dn_forward.1} parent=1 // pred_fallthru
      _
    // Predicated region
    $region14: #{another_dn_forward.1} parent=1 // pred_check
      _
    $region15: #{another_dn_forward.1} parent=1 // pred_check_branch
      %40 = sbr.rel (0) target = $region17
    $region16: #{another_dn_forward.1} parent=1 // pred_region
      %s42 = ssub.s32 9216, 9216
      %43 = vsyncadd [#allocation6], %s42
      %s44 = sshll.u32 [#allocation5], 4
      %s45 = int_to_ptr.vmem [resolvable:$true] %s44
      %50 = dma.hbm_to_vmem [thread:$0]  %s3, 9216, %s45, [#allocation6], 192, 192, 12
    $region17: #{another_dn_forward.1} parent=1 // pred_fallthru
      _
    // Predicated region
    $region18: #{another_dn_forward.1} parent=1 // pred_check
      _
    $region19: #{another_dn_forward.1} parent=1 // pred_check_branch
      %52 = sbr.rel (0) target = $region21
    $region20: #{another_dn_forward.1} parent=1 // pred_region
      _
    $region21: #{another_dn_forward.1} parent=1 // pred_fallthru
      _
    // Predicated region
    $region22: #{another_dn_forward.1} parent=1 // pred_check
      _
    $region23: #{another_dn_forward.1} parent=1 // pred_check_branch
      %54 = sbr.rel (0) target = $region25
    $region24: #{another_dn_forward.1} parent=1 // pred_region
      %s56 = ssub.s32 9216, 9216
      %57 = vsyncadd [#allocation6], %s56
      %s58 = sshll.u32 [#allocation7], 4
      %s59 = int_to_ptr.vmem [resolvable:$true] %s58
      %64 = dma.hbm_to_vmem [thread:$0]  %s5, 9216, %s59, [#allocation6], 192, 192, 12
    $region25: #{another_dn_forward.1} parent=1 // pred_fallthru
      _
    // Predicated region
    $region26: #{another_dn_forward.1} parent=1 // pred_check
      _
    $region27: #{another_dn_forward.1} parent=1 // pred_check_branch
      %66 = sbr.rel (0) target = $region29
    $region28: #{another_dn_forward.1} parent=1 // pred_region
      _
    $region29: #{another_dn_forward.1} parent=1 // pred_fallthru
      _
    // Predicated region
    $region30: #{another_dn_forward.1} parent=1 // pred_check
      _
    $region31: #{another_dn_forward.1} parent=1 // pred_check_branch
      %68 = sbr.rel (0) target = $region33
    $region32: #{another_dn_forward.1} parent=1 // pred_region
      %s70 = ssub.s32 9216, 9216
      %71 = vsyncadd [#allocation9], %s70
      %s72 = sshll.u32 [#allocation8], 4
      %s73 = int_to_ptr.vmem [resolvable:$true] %s72
      %78 = dma.hbm_to_vmem [thread:$0]  %s7, 9216, %s73, [#allocation9], 192, 192, 12
    $region33: #{another_dn_forward.1} parent=1 // pred_fallthru
      _
    // Predicated region
    $region34: #{another_dn_forward.1} parent=1 // pred_check
      _
    $region35: #{another_dn_forward.1} parent=1 // pred_check_branch
      %80 = sbr.rel (0) target = $region37
    $region36: #{another_dn_forward.1} parent=1 // pred_region
      _
    $region37: #{another_dn_forward.1} parent=1 // pred_fallthru
      _
    // Predicated region
    $region38: #{another_dn_forward.1} parent=1 // pred_check
      _
    $region39: #{another_dn_forward.1} parent=1 // pred_check_branch
      %82 = sbr.rel (0) target = $region41
    $region40: #{another_dn_forward.1} parent=1 // pred_region
      %s84 = ssub.s32 9216, 9216
      %85 = vsyncadd [#allocation9], %s84
      %s86 = sshll.u32 [#allocation10], 4
      %s87 = int_to_ptr.vmem [resolvable:$true] %s86
      %92 = dma.hbm_to_vmem [thread:$0]  %s9, 9216, %s87, [#allocation9], 192, 192, 12
    $region41: #{another_dn_forward.1} parent=1 // pred_fallthru
      _
    // Predicated region
    $region42: #{another_dn_forward.1} parent=1 // pred_check
      _
    $region43: #{another_dn_forward.1} parent=1 // pred_check_branch
      %94 = sbr.rel (0) target = $region45
    $region44: #{another_dn_forward.1} parent=1 // pred_region
      _
    $region45: #{another_dn_forward.1} parent=1 // pred_fallthru
      _
    // Predicated region
    $region46: #{another_dn_forward.1} parent=1 // pred_check
      _
    $region47: #{another_dn_forward.1} parent=1 // pred_check_branch
      %96 = sbr.rel (0) target = $region49
    $region48: #{another_dn_forward.1} parent=1 // pred_region
      %s98 = ssub.s32 3072, 3072
      %99 = vsyncadd [#allocation12], %s98
      %s100 = sshll.u32 [#allocation11], 4
      %s101 = int_to_ptr.vmem [resolvable:$true] %s100
      %106 = dma.hbm_to_vmem [thread:$0]  %s11, 3072, %s101, [#allocation12], 64, 64, 4
    $region49: #{another_dn_forward.1} parent=1 // pred_fallthru
      _
    // Predicated region
    $region50: #{another_dn_forward.1} parent=1 // pred_check
      _
    $region51: #{another_dn_forward.1} parent=1 // pred_check_branch
      %108 = sbr.rel (0) target = $region53
    $region52: #{another_dn_forward.1} parent=1 // pred_region
      _
    $region53: #{another_dn_forward.1} parent=1 // pred_fallthru
      _
    // Predicated region
    $region54: #{another_dn_forward.1} parent=1 // pred_check
      _
    $region55: #{another_dn_forward.1} parent=1 // pred_check_branch
      %110 = sbr.rel (0) target = $region57
    $region56: #{another_dn_forward.1} parent=1 // pred_region
      %111 = dma.done [#allocation3], 3072
    $region57: #{another_dn_forward.1} parent=1 // pred_fallthru
      _
    // Predicated region
    $region58: #{another_dn_forward.1} parent=1 // pred_check
      _
    $region59: #{another_dn_forward.1} parent=1 // pred_check_branch
      %113 = sbr.rel (0) target = $region61
    $region60: #{another_dn_forward.1} parent=1 // pred_region
      %114 = dma.done [#allocation6], 9216
    $region61: #{another_dn_forward.1} parent=1 // pred_fallthru
      _
    // Predicated region
    $region62: #{another_dn_forward.1} parent=1 // pred_check
      _
    $region63: #{another_dn_forward.1} parent=1 // pred_check_branch
      %116 = sbr.rel (0) target = $region65
    $region64: #{another_dn_forward.1} parent=1 // pred_region
      %117 = dma.done [#allocation6], 9216
    $region65: #{another_dn_forward.1} parent=1 // pred_fallthru
      _
    // Predicated region
    $region66: #{another_dn_forward.1} parent=1 // pred_check
      _
    $region67: #{another_dn_forward.1} parent=1 // pred_check_branch
      %119 = sbr.rel (0) target = $region69
    $region68: #{another_dn_forward.1} parent=1 // pred_region
      %120 = dma.done [#allocation9], 9216
    $region69: #{another_dn_forward.1} parent=1 // pred_fallthru
      _
    // Predicated region
    $region70: #{another_dn_forward.1} parent=1 // pred_check
      _
    $region71: #{another_dn_forward.1} parent=1 // pred_check_branch
      %122 = sbr.rel (0) target = $region73
    $region72: #{another_dn_forward.1} parent=1 // pred_region
      %123 = dma.done [#allocation9], 9216
    $region73: #{another_dn_forward.1} parent=1 // pred_fallthru
      _
    // Predicated region
    $region74: #{another_dn_forward.1} parent=1 // pred_check
      _
    $region75: #{another_dn_forward.1} parent=1 // pred_check_branch
      %125 = sbr.rel (0) target = $region77
    $region76: #{another_dn_forward.1} parent=1 // pred_region
      %126 = dma.done [#allocation12], 3072
    $region77: #{another_dn_forward.1} parent=1 // pred_fallthru
      _
    %v128 = vld [vmem:[%s0] sm:$0xff]
    %v129 = vld [vmem:[%s0 + $0x8] sm:$0xff]
    %v130 = vpack.c.bf16 %v129, %v128
    %v131 = vld [vmem:[#allocation2] sm:$0xff]
    %v132 = vld [vmem:[#allocation2 + $0x8] sm:$0xf]
    %v133 = vld [vmem:[#allocation2 + $0xc] sm:$0xff]
    %v134 = vld [vmem:[#allocation2 + $0x14] sm:$0xf]
    %v135 = vld [vmem:[#allocation2 + $0x18] sm:$0xff]
    %v136 = vld [vmem:[#allocation2 + $0x20] sm:$0xf]
    %v137 = vld [vmem:[#allocation2 + $0x24] sm:$0xff]
    %v138 = vld [vmem:[#allocation2 + $0x2c] sm:$0xf]
    %v139 = vld [vmem:[#allocation2 + $0x30] sm:$0xff]
    %v140 = vld [vmem:[#allocation2 + $0x38] sm:$0xf]
    %v141 = vld [vmem:[#allocation2 + $0x3c] sm:$0xff]
    %v142 = vld [vmem:[#allocation2 + $0x44] sm:$0xf]
    %v143 = vld [vmem:[#allocation2 + $0x48] sm:$0xff]
    %v144 = vld [vmem:[#allocation2 + $0x50] sm:$0xf]
    %v145 = vld [vmem:[#allocation2 + $0x54] sm:$0xff]
    %v146 = vld [vmem:[#allocation2 + $0x5c] sm:$0xf]
    %v147 = vld [vmem:[#allocation2 + $0x60] sm:$0xff]
    %v148 = vld [vmem:[#allocation2 + $0x68] sm:$0xf]
    %v149 = vld [vmem:[#allocation2 + $0x6c] sm:$0xff]
    %v150 = vld [vmem:[#allocation2 + $0x74] sm:$0xf]
    %v151 = vld [vmem:[#allocation2 + $0x78] sm:$0xff]
    %v152 = vld [vmem:[#allocation2 + $0x80] sm:$0xf]
    %v153 = vld [vmem:[#allocation2 + $0x84] sm:$0xff]
    %v154 = vld [vmem:[#allocation2 + $0x8c] sm:$0xf]
    %v155 = vld [vmem:[#allocation2 + $0x90] sm:$0xff]
    %v156 = vld [vmem:[#allocation2 + $0x98] sm:$0xf]
    %v157 = vld [vmem:[#allocation2 + $0x9c] sm:$0xff]
    %v158 = vld [vmem:[#allocation2 + $0xa4] sm:$0xf]
    %v159 = vld [vmem:[#allocation2 + $0xa8] sm:$0xff]
    %v160 = vld [vmem:[#allocation2 + $0xb0] sm:$0xf]
    %v161 = vld [vmem:[#allocation2 + $0xb4] sm:$0xff]
    %v162 = vld [vmem:[#allocation2 + $0xbc] sm:$0xf]
    %v163 = vld [vmem:[%s2] sm:$0x7]
    %v165 = vlaneseq
    %v166 = vshrl.u32 %v165, 7
    %v167 = vsub.s32 0, %v166
    %v168 = vrot.slane %v163, %v167
    %v169 = vlaneseq
    %v170 = vshrl.u32 %v169, 7
    %v171 = vsub.s32 1, %v170
    %v172 = vrot.slane %v163, %v171
    %v173 = vlaneseq
    %v174 = vshrl.u32 %v173, 7
    %v175 = vsub.s32 2, %v174
    %v176 = vrot.slane %v163, %v175
    %v212 = vunpack.c.l.b16 %v131
    %v213 = vunpack.c.h.b16 %v131
    %v214 = vunpack.c.l.b16 %v132
    %v215 = vunpack.c.l.b16 %v133
    %v216 = vunpack.c.h.b16 %v133
    %v217 = vunpack.c.l.b16 %v134
    %v218 = vunpack.c.l.b16 %v135
    %v219 = vunpack.c.h.b16 %v135
    %v220 = vunpack.c.l.b16 %v136
    %v221 = vunpack.c.l.b16 %v137
    %v222 = vunpack.c.h.b16 %v137
    %v223 = vunpack.c.l.b16 %v138
    %v224 = vunpack.c.l.b16 %v139
    %v225 = vunpack.c.h.b16 %v139
    %v226 = vunpack.c.l.b16 %v140
    %v227 = vunpack.c.l.b16 %v141
    %v228 = vunpack.c.h.b16 %v141
    %v229 = vunpack.c.l.b16 %v142
    %v230 = vunpack.c.l.b16 %v143
    %v231 = vunpack.c.h.b16 %v143
    %v232 = vunpack.c.l.b16 %v144
    %v233 = vunpack.c.l.b16 %v145
    %v234 = vunpack.c.h.b16 %v145
    %v235 = vunpack.c.l.b16 %v146
    %v236 = vunpack.c.l.b16 %v147
    %v237 = vunpack.c.h.b16 %v147
    %v238 = vunpack.c.l.b16 %v148
    %v239 = vunpack.c.l.b16 %v149
    %v240 = vunpack.c.h.b16 %v149
    %v241 = vunpack.c.l.b16 %v150
    %v242 = vunpack.c.l.b16 %v151
    %v243 = vunpack.c.h.b16 %v151
    %v244 = vunpack.c.l.b16 %v152
    %v245 = vunpack.c.l.b16 %v153
    %v246 = vunpack.c.h.b16 %v153
    %v247 = vunpack.c.l.b16 %v154
    %v248 = vunpack.c.l.b16 %v155
    %v249 = vunpack.c.h.b16 %v155
    %v250 = vunpack.c.l.b16 %v156
    %v251 = vunpack.c.l.b16 %v157
    %v252 = vunpack.c.h.b16 %v157
    %v253 = vunpack.c.l.b16 %v158
    %v254 = vunpack.c.l.b16 %v159
    %v255 = vunpack.c.h.b16 %v159
    %v256 = vunpack.c.l.b16 %v160
    %v257 = vunpack.c.l.b16 %v161
    %v258 = vunpack.c.h.b16 %v161
    %v259 = vunpack.c.l.b16 %v162
    %v260 = vpack.c.b16 %v215, %v212
    %v261 = vpack.c.b16 %v216, %v213
    %v262 = vpack.c.b16 %v217, %v214
    %v263 = vpack.c.b16 %v221, %v218
    %v264 = vpack.c.b16 %v222, %v219
    %v265 = vpack.c.b16 %v223, %v220
    %v266 = vpack.c.b16 %v227, %v224
    %v267 = vpack.c.b16 %v228, %v225
    %v268 = vpack.c.b16 %v229, %v226
    %v269 = vpack.c.b16 %v233, %v230
    %v270 = vpack.c.b16 %v234, %v231
    %v271 = vpack.c.b16 %v235, %v232
    %v272 = vpack.c.b16 %v239, %v236
    %v273 = vpack.c.b16 %v240, %v237
    %v274 = vpack.c.b16 %v241, %v238
    %v275 = vpack.c.b16 %v245, %v242
    %v276 = vpack.c.b16 %v246, %v243
    %v277 = vpack.c.b16 %v247, %v244
    %v278 = vpack.c.b16 %v251, %v248
    %v279 = vpack.c.b16 %v252, %v249
    %v280 = vpack.c.b16 %v253, %v250
    %v281 = vpack.c.b16 %v257, %v254
    %v282 = vpack.c.b16 %v258, %v255
    %v283 = vpack.c.b16 %v259, %v256
    %308 = vmatprep.subr.bf16.mxu0 %v261
    %309 = vmatpush1.bf16.msra.mxu0 %v260
    %310 = vmatprep.subr.bf16.mxu0 %v264
    %311 = vmatpush1.bf16.msra.mxu0 %v263
    %312 = vmatprep.subr.bf16.mxu0 %v267
    %313 = vmatpush1.bf16.msra.mxu0 %v266
    %314 = vmatprep.subr.bf16.mxu0 %v270
    %315 = vmatpush1.bf16.msra.mxu0 %v269
    %316 = vmatprep.subr.bf16.mxu0 %v273
    %317 = vmatpush1.bf16.msra.mxu0 %v272
    %318 = vmatprep.subr.bf16.mxu0 %v276
    %319 = vmatpush1.bf16.msra.mxu0 %v275
    %320 = vmatprep.subr.bf16.mxu0 %v279
    %321 = vmatpush1.bf16.msra.mxu0 %v278
    %322 = vmatprep.subr.bf16.mxu0 %v282
    %323 = vmatpush1.bf16.msra.mxu0 %v281
    %324 = vmatprep.subr.bf16.mxu0 0
    %325 = vmatpush1.bf16.msra.mxu0 0
    %326 = vmatprep.subr.bf16.mxu0 0
    %327 = vmatpush1.bf16.msra.mxu0 0
    %328 = vmatprep.subr.bf16.mxu0 0
    %329 = vmatpush1.bf16.msra.mxu0 0
    %330 = vmatprep.subr.bf16.mxu0 0
    %331 = vmatpush1.bf16.msra.mxu0 0
    %332 = vmatprep.subr.bf16.mxu0 0
    %333 = vmatpush1.bf16.msra.mxu0 0
    %334 = vmatprep.subr.bf16.mxu0 0
    %335 = vmatpush1.bf16.msra.mxu0 0
    %336 = vmatprep.subr.bf16.mxu0 0
    %337 = vmatpush1.bf16.msra.mxu0 0
    %338 = vmatprep.subr.bf16.mxu0 0
    %339 = vmatpush1.bf16.msra.mxu0 0
    %340 = vmatprep.mubr.bf16.mxu0 0
    %341 = vmatmul.mubr.bf16.gmra.mrb[0].mxu0 %v130
    %v342 = vpop.f32.mrb[0].mxu0
    %v343 = vadd.f32 %v168, %v342
    %v344 = vpop.f32.mrb[0].mxu0
    %v345 = vadd.f32 %v172, %v344
    %v346 = vpop.f32.mrb[0].mxu0
    %v347 = vadd.f32 %v168, %v346
    %v348 = vpop.f32.mrb[0].mxu0
    %v349 = vadd.f32 %v172, %v348
    %350 = vdwg.mxu0
    %351 = vmatprep.subr.bf16.mxu0 0
    %352 = vmatpush1.bf16.msra.mxu0 %v262
    %353 = vmatprep.subr.bf16.mxu0 0
    %354 = vmatpush1.bf16.msra.mxu0 %v265
    %355 = vmatprep.subr.bf16.mxu0 0
    %356 = vmatpush1.bf16.msra.mxu0 %v268
    %357 = vmatprep.subr.bf16.mxu0 0
    %358 = vmatpush1.bf16.msra.mxu0 %v271
    %359 = vmatprep.subr.bf16.mxu0 0
    %360 = vmatpush1.bf16.msra.mxu0 %v274
    %361 = vmatprep.subr.bf16.mxu0 0
    %362 = vmatpush1.bf16.msra.mxu0 %v277
    %363 = vmatprep.subr.bf16.mxu0 0
    %364 = vmatpush1.bf16.msra.mxu0 %v280
    %365 = vmatprep.subr.bf16.mxu0 0
    %366 = vmatpush1.bf16.msra.mxu0 %v283
    %367 = vmatprep.subr.bf16.mxu0 0
    %368 = vmatpush1.bf16.msra.mxu0 0
    %369 = vmatprep.subr.bf16.mxu0 0
    %370 = vmatpush1.bf16.msra.mxu0 0
    %371 = vmatprep.subr.bf16.mxu0 0
    %372 = vmatpush1.bf16.msra.mxu0 0
    %373 = vmatprep.subr.bf16.mxu0 0
    %374 = vmatpush1.bf16.msra.mxu0 0
    %375 = vmatprep.subr.bf16.mxu0 0
    %376 = vmatpush1.bf16.msra.mxu0 0
    %377 = vmatprep.subr.bf16.mxu0 0
    %378 = vmatpush1.bf16.msra.mxu0 0
    %379 = vmatprep.subr.bf16.mxu0 0
    %380 = vmatpush1.bf16.msra.mxu0 0
    %381 = vmatprep.subr.bf16.mxu0 0
    %382 = vmatpush1.bf16.msra.mxu0 0
    %383 = vmatprep.mubr.bf16.mxu0 0
    %384 = vmatmul.mubr.bf16.gmra.mrb[0].mxu0 %v130
    %v385 = vpop.f32.mrb[0].mxu0
    %v386 = vadd.f32 %v176, %v385
    %v387 = vpop.f32.mrb[0].mxu0
    %v388 = vpop.f32.mrb[0].mxu0
    %v389 = vadd.f32 %v176, %v388
    %v390 = vpop.f32.mrb[0].mxu0
    %391 = vdwg.mxu0
    %v392 = vmax.f32 %v343, 0.0
    %v393 = vmax.f32 %v345, 0.0
    %v394 = vmax.f32 %v386, 0.0
    %v395 = vmax.f32 %v347, 0.0
    %v396 = vmax.f32 %v349, 0.0
    %v397 = vmax.f32 %v389, 0.0
    %v398 = vpack.c.bf16 %v395, %v392
    %v399 = vpack.c.bf16 %v396, %v393
    %v400 = vpack.c.bf16 %v397, %v394
    %v401 = vld [vmem:[#allocation5] sm:$0xff]
    %v402 = vld [vmem:[#allocation5 + $0x8] sm:$0xf]
    %v403 = vld [vmem:[#allocation5 + $0xc] sm:$0xff]
    %v404 = vld [vmem:[#allocation5 + $0x14] sm:$0xf]
    %v405 = vld [vmem:[#allocation5 + $0x18] sm:$0xff]
    %v406 = vld [vmem:[#allocation5 + $0x20] sm:$0xf]
    %v407 = vld [vmem:[#allocation5 + $0x24] sm:$0xff]
    %v408 = vld [vmem:[#allocation5 + $0x2c] sm:$0xf]
    %v409 = vld [vmem:[#allocation5 + $0x30] sm:$0xff]
    %v410 = vld [vmem:[#allocation5 + $0x38] sm:$0xf]
    %v411 = vld [vmem:[#allocation5 + $0x3c] sm:$0xff]
    %v412 = vld [vmem:[#allocation5 + $0x44] sm:$0xf]
    %v413 = vld [vmem:[#allocation5 + $0x48] sm:$0xff]
    %v414 = vld [vmem:[#allocation5 + $0x50] sm:$0xf]
    %v415 = vld [vmem:[#allocation5 + $0x54] sm:$0xff]
    %v416 = vld [vmem:[#allocation5 + $0x5c] sm:$0xf]
    %v417 = vld [vmem:[#allocation5 + $0x60] sm:$0xff]
    %v418 = vld [vmem:[#allocation5 + $0x68] sm:$0xf]
    %v419 = vld [vmem:[#allocation5 + $0x6c] sm:$0xff]
    %v420 = vld [vmem:[#allocation5 + $0x74] sm:$0xf]
    %v421 = vld [vmem:[#allocation5 + $0x78] sm:$0xff]
    %v422 = vld [vmem:[#allocation5 + $0x80] sm:$0xf]
    %v423 = vld [vmem:[#allocation5 + $0x84] sm:$0xff]
    %v424 = vld [vmem:[#allocation5 + $0x8c] sm:$0xf]
    %v425 = vld [vmem:[#allocation5 + $0x90] sm:$0xff]
    %v426 = vld [vmem:[#allocation5 + $0x98] sm:$0xf]
    %v427 = vld [vmem:[#allocation5 + $0x9c] sm:$0xff]
    %v428 = vld [vmem:[#allocation5 + $0xa4] sm:$0xf]
    %v429 = vld [vmem:[#allocation5 + $0xa8] sm:$0xff]
    %v430 = vld [vmem:[#allocation5 + $0xb0] sm:$0xf]
    %v431 = vld [vmem:[#allocation5 + $0xb4] sm:$0xff]
    %v432 = vld [vmem:[#allocation5 + $0xbc] sm:$0xf]
    %v433 = vld [vmem:[#allocation5 + $0xc0] sm:$0xff]
    %v434 = vld [vmem:[#allocation5 + $0xc8] sm:$0xf]
    %v435 = vld [vmem:[#allocation5 + $0xcc] sm:$0xff]
    %v436 = vld [vmem:[#allocation5 + $0xd4] sm:$0xf]
    %v437 = vld [vmem:[#allocation5 + $0xd8] sm:$0xff]
    %v438 = vld [vmem:[#allocation5 + $0xe0] sm:$0xf]
    %v439 = vld [vmem:[#allocation5 + $0xe4] sm:$0xff]
    %v440 = vld [vmem:[#allocation5 + $0xec] sm:$0xf]
    %v441 = vld [vmem:[#allocation5 + $0xf0] sm:$0xff]
    %v442 = vld [vmem:[#allocation5 + $0xf8] sm:$0xf]
    %v443 = vld [vmem:[#allocation5 + $0xfc] sm:$0xff]
    %v444 = vld [vmem:[#allocation5 + $0x104] sm:$0xf]
    %v445 = vld [vmem:[#allocation5 + $0x108] sm:$0xff]
    %v446 = vld [vmem:[#allocation5 + $0x110] sm:$0xf]
    %v447 = vld [vmem:[#allocation5 + $0x114] sm:$0xff]
    %v448 = vld [vmem:[#allocation5 + $0x11c] sm:$0xf]
    %v449 = vld [vmem:[#allocation5 + $0x120] sm:$0xff]
    %v450 = vld [vmem:[#allocation5 + $0x128] sm:$0xf]
    %v451 = vld [vmem:[#allocation5 + $0x12c] sm:$0xff]
    %v452 = vld [vmem:[#allocation5 + $0x134] sm:$0xf]
    %v453 = vld [vmem:[#allocation5 + $0x138] sm:$0xff]
    %v454 = vld [vmem:[#allocation5 + $0x140] sm:$0xf]
    %v455 = vld [vmem:[#allocation5 + $0x144] sm:$0xff]
    %v456 = vld [vmem:[#allocation5 + $0x14c] sm:$0xf]
    %v457 = vld [vmem:[#allocation5 + $0x150] sm:$0xff]
    %v458 = vld [vmem:[#allocation5 + $0x158] sm:$0xf]
    %v459 = vld [vmem:[#allocation5 + $0x15c] sm:$0xff]
    %v460 = vld [vmem:[#allocation5 + $0x164] sm:$0xf]
    %v461 = vld [vmem:[#allocation5 + $0x168] sm:$0xff]
    %v462 = vld [vmem:[#allocation5 + $0x170] sm:$0xf]
    %v463 = vld [vmem:[#allocation5 + $0x174] sm:$0xff]
    %v464 = vld [vmem:[#allocation5 + $0x17c] sm:$0xf]
    %v465 = vld [vmem:[#allocation5 + $0x180] sm:$0xff]
    %v466 = vld [vmem:[#allocation5 + $0x188] sm:$0xf]
    %v467 = vld [vmem:[#allocation5 + $0x18c] sm:$0xff]
    %v468 = vld [vmem:[#allocation5 + $0x194] sm:$0xf]
    %v469 = vld [vmem:[#allocation5 + $0x198] sm:$0xff]
    %v470 = vld [vmem:[#allocation5 + $0x1a0] sm:$0xf]
    %v471 = vld [vmem:[#allocation5 + $0x1a4] sm:$0xff]
    %v472 = vld [vmem:[#allocation5 + $0x1ac] sm:$0xf]
    %v473 = vld [vmem:[#allocation5 + $0x1b0] sm:$0xff]
    %v474 = vld [vmem:[#allocation5 + $0x1b8] sm:$0xf]
    %v475 = vld [vmem:[#allocation5 + $0x1bc] sm:$0xff]
    %v476 = vld [vmem:[#allocation5 + $0x1c4] sm:$0xf]
    %v477 = vld [vmem:[#allocation5 + $0x1c8] sm:$0xff]
    %v478 = vld [vmem:[#allocation5 + $0x1d0] sm:$0xf]
    %v479 = vld [vmem:[#allocation5 + $0x1d4] sm:$0xff]
    %v480 = vld [vmem:[#allocation5 + $0x1dc] sm:$0xf]
    %v481 = vld [vmem:[#allocation5 + $0x1e0] sm:$0xff]
    %v482 = vld [vmem:[#allocation5 + $0x1e8] sm:$0xf]
    %v483 = vld [vmem:[#allocation5 + $0x1ec] sm:$0xff]
    %v484 = vld [vmem:[#allocation5 + $0x1f4] sm:$0xf]
    %v485 = vld [vmem:[#allocation5 + $0x1f8] sm:$0xff]
    %v486 = vld [vmem:[#allocation5 + $0x200] sm:$0xf]
    %v487 = vld [vmem:[#allocation5 + $0x204] sm:$0xff]
    %v488 = vld [vmem:[#allocation5 + $0x20c] sm:$0xf]
    %v489 = vld [vmem:[#allocation5 + $0x210] sm:$0xff]
    %v490 = vld [vmem:[#allocation5 + $0x218] sm:$0xf]
    %v491 = vld [vmem:[#allocation5 + $0x21c] sm:$0xff]
    %v492 = vld [vmem:[#allocation5 + $0x224] sm:$0xf]
    %v493 = vld [vmem:[#allocation5 + $0x228] sm:$0xff]
    %v494 = vld [vmem:[#allocation5 + $0x230] sm:$0xf]
    %v495 = vld [vmem:[#allocation5 + $0x234] sm:$0xff]
    %v496 = vld [vmem:[#allocation5 + $0x23c] sm:$0xf]
    %v497 = vld [vmem:[%s4] sm:$0x7]
    %v499 = vlaneseq
    %v500 = vshrl.u32 %v499, 7
    %v501 = vsub.s32 0, %v500
    %v502 = vrot.slane %v497, %v501
    %v503 = vlaneseq
    %v504 = vshrl.u32 %v503, 7
    %v505 = vsub.s32 1, %v504
    %v506 = vrot.slane %v497, %v505
    %v507 = vlaneseq
    %v508 = vshrl.u32 %v507, 7
    %v509 = vsub.s32 2, %v508
    %v510 = vrot.slane %v497, %v509
    %v610 = vunpack.c.l.b16 %v401
    %v611 = vunpack.c.h.b16 %v401
    %v612 = vunpack.c.l.b16 %v402
    %v613 = vunpack.c.l.b16 %v403
    %v614 = vunpack.c.h.b16 %v403
    %v615 = vunpack.c.l.b16 %v404
    %v616 = vunpack.c.l.b16 %v405
    %v617 = vunpack.c.h.b16 %v405
    %v618 = vunpack.c.l.b16 %v406
    %v619 = vunpack.c.l.b16 %v407
    %v620 = vunpack.c.h.b16 %v407
    %v621 = vunpack.c.l.b16 %v408
    %v622 = vunpack.c.l.b16 %v409
    %v623 = vunpack.c.h.b16 %v409
    %v624 = vunpack.c.l.b16 %v410
    %v625 = vunpack.c.l.b16 %v411
    %v626 = vunpack.c.h.b16 %v411
    %v627 = vunpack.c.l.b16 %v412
    %v628 = vunpack.c.l.b16 %v413
    %v629 = vunpack.c.h.b16 %v413
    %v630 = vunpack.c.l.b16 %v414
    %v631 = vunpack.c.l.b16 %v415
    %v632 = vunpack.c.h.b16 %v415
    %v633 = vunpack.c.l.b16 %v416
    %v634 = vunpack.c.l.b16 %v417
    %v635 = vunpack.c.h.b16 %v417
    %v636 = vunpack.c.l.b16 %v418
    %v637 = vunpack.c.l.b16 %v419
    %v638 = vunpack.c.h.b16 %v419
    %v639 = vunpack.c.l.b16 %v420
    %v640 = vunpack.c.l.b16 %v421
    %v641 = vunpack.c.h.b16 %v421
    %v642 = vunpack.c.l.b16 %v422
    %v643 = vunpack.c.l.b16 %v423
    %v644 = vunpack.c.h.b16 %v423
    %v645 = vunpack.c.l.b16 %v424
    %v646 = vunpack.c.l.b16 %v425
    %v647 = vunpack.c.h.b16 %v425
    %v648 = vunpack.c.l.b16 %v426
    %v649 = vunpack.c.l.b16 %v427
    %v650 = vunpack.c.h.b16 %v427
    %v651 = vunpack.c.l.b16 %v428
    %v652 = vunpack.c.l.b16 %v429
    %v653 = vunpack.c.h.b16 %v429
    %v654 = vunpack.c.l.b16 %v430
    %v655 = vunpack.c.l.b16 %v431
    %v656 = vunpack.c.h.b16 %v431
    %v657 = vunpack.c.l.b16 %v432
    %v658 = vunpack.c.l.b16 %v433
    %v659 = vunpack.c.h.b16 %v433
    %v660 = vunpack.c.l.b16 %v434
    %v661 = vunpack.c.l.b16 %v435
    %v662 = vunpack.c.h.b16 %v435
    %v663 = vunpack.c.l.b16 %v436
    %v664 = vunpack.c.l.b16 %v437
    %v665 = vunpack.c.h.b16 %v437
    %v666 = vunpack.c.l.b16 %v438
    %v667 = vunpack.c.l.b16 %v439
    %v668 = vunpack.c.h.b16 %v439
    %v669 = vunpack.c.l.b16 %v440
    %v670 = vunpack.c.l.b16 %v441
    %v671 = vunpack.c.h.b16 %v441
    %v672 = vunpack.c.l.b16 %v442
    %v673 = vunpack.c.l.b16 %v443
    %v674 = vunpack.c.h.b16 %v443
    %v675 = vunpack.c.l.b16 %v444
    %v676 = vunpack.c.l.b16 %v445
    %v677 = vunpack.c.h.b16 %v445
    %v678 = vunpack.c.l.b16 %v446
    %v679 = vunpack.c.l.b16 %v447
    %v680 = vunpack.c.h.b16 %v447
    %v681 = vunpack.c.l.b16 %v448
    %v682 = vunpack.c.l.b16 %v449
    %v683 = vunpack.c.h.b16 %v449
    %v684 = vunpack.c.l.b16 %v450
    %v685 = vunpack.c.l.b16 %v451
    %v686 = vunpack.c.h.b16 %v451
    %v687 = vunpack.c.l.b16 %v452
    %v688 = vunpack.c.l.b16 %v453
    %v689 = vunpack.c.h.b16 %v453
    %v690 = vunpack.c.l.b16 %v454
    %v691 = vunpack.c.l.b16 %v455
    %v692 = vunpack.c.h.b16 %v455
    %v693 = vunpack.c.l.b16 %v456
    %v694 = vunpack.c.l.b16 %v457
    %v695 = vunpack.c.h.b16 %v457
    %v696 = vunpack.c.l.b16 %v458
    %v697 = vunpack.c.l.b16 %v459
    %v698 = vunpack.c.h.b16 %v459
    %v699 = vunpack.c.l.b16 %v460
    %v700 = vunpack.c.l.b16 %v461
    %v701 = vunpack.c.h.b16 %v461
    %v702 = vunpack.c.l.b16 %v462
    %v703 = vunpack.c.l.b16 %v463
    %v704 = vunpack.c.h.b16 %v463
    %v705 = vunpack.c.l.b16 %v464
    %v706 = vunpack.c.l.b16 %v465
    %v707 = vunpack.c.h.b16 %v465
    %v708 = vunpack.c.l.b16 %v466
    %v709 = vunpack.c.l.b16 %v467
    %v710 = vunpack.c.h.b16 %v467
    %v711 = vunpack.c.l.b16 %v468
    %v712 = vunpack.c.l.b16 %v469
    %v713 = vunpack.c.h.b16 %v469
    %v714 = vunpack.c.l.b16 %v470
    %v715 = vunpack.c.l.b16 %v471
    %v716 = vunpack.c.h.b16 %v471
    %v717 = vunpack.c.l.b16 %v472
    %v718 = vunpack.c.l.b16 %v473
    %v719 = vunpack.c.h.b16 %v473
    %v720 = vunpack.c.l.b16 %v474
    %v721 = vunpack.c.l.b16 %v475
    %v722 = vunpack.c.h.b16 %v475
    %v723 = vunpack.c.l.b16 %v476
    %v724 = vunpack.c.l.b16 %v477
    %v725 = vunpack.c.h.b16 %v477
    %v726 = vunpack.c.l.b16 %v478
    %v727 = vunpack.c.l.b16 %v479
    %v728 = vunpack.c.h.b16 %v479
    %v729 = vunpack.c.l.b16 %v480
    %v730 = vunpack.c.l.b16 %v481
    %v731 = vunpack.c.h.b16 %v481
    %v732 = vunpack.c.l.b16 %v482
    %v733 = vunpack.c.l.b16 %v483
    %v734 = vunpack.c.h.b16 %v483
    %v735 = vunpack.c.l.b16 %v484
    %v736 = vunpack.c.l.b16 %v485
    %v737 = vunpack.c.h.b16 %v485
    %v738 = vunpack.c.l.b16 %v486
    %v739 = vunpack.c.l.b16 %v487
    %v740 = vunpack.c.h.b16 %v487
    %v741 = vunpack.c.l.b16 %v488
    %v742 = vunpack.c.l.b16 %v489
    %v743 = vunpack.c.h.b16 %v489
    %v744 = vunpack.c.l.b16 %v490
    %v745 = vunpack.c.l.b16 %v491
    %v746 = vunpack.c.h.b16 %v491
    %v747 = vunpack.c.l.b16 %v492
    %v748 = vunpack.c.l.b16 %v493
    %v749 = vunpack.c.h.b16 %v493
    %v750 = vunpack.c.l.b16 %v494
    %v751 = vunpack.c.l.b16 %v495
    %v752 = vunpack.c.h.b16 %v495
    %v753 = vunpack.c.l.b16 %v496
    %v754 = vpack.c.b16 %v613, %v610
    %v755 = vpack.c.b16 %v614, %v611
    %v756 = vpack.c.b16 %v615, %v612
    %v757 = vpack.c.b16 %v619, %v616
    %v758 = vpack.c.b16 %v620, %v617
    %v759 = vpack.c.b16 %v621, %v618
    %v760 = vpack.c.b16 %v625, %v622
    %v761 = vpack.c.b16 %v626, %v623
    %v762 = vpack.c.b16 %v627, %v624
    %v763 = vpack.c.b16 %v631, %v628
    %v764 = vpack.c.b16 %v632, %v629
    %v765 = vpack.c.b16 %v633, %v630
    %v766 = vpack.c.b16 %v637, %v634
    %v767 = vpack.c.b16 %v638, %v635
    %v768 = vpack.c.b16 %v639, %v636
    %v769 = vpack.c.b16 %v643, %v640
    %v770 = vpack.c.b16 %v644, %v641
    %v771 = vpack.c.b16 %v645, %v642
    %v772 = vpack.c.b16 %v649, %v646
    %v773 = vpack.c.b16 %v650, %v647
    %v774 = vpack.c.b16 %v651, %v648
    %v775 = vpack.c.b16 %v655, %v652
    %v776 = vpack.c.b16 %v656, %v653
    %v777 = vpack.c.b16 %v657, %v654
    %v778 = vpack.c.b16 %v661, %v658
    %v779 = vpack.c.b16 %v662, %v659
    %v780 = vpack.c.b16 %v663, %v660
    %v781 = vpack.c.b16 %v667, %v664
    %v782 = vpack.c.b16 %v668, %v665
    %v783 = vpack.c.b16 %v669, %v666
    %v784 = vpack.c.b16 %v673, %v670
    %v785 = vpack.c.b16 %v674, %v671
    %v786 = vpack.c.b16 %v675, %v672
    %v787 = vpack.c.b16 %v679, %v676
    %v788 = vpack.c.b16 %v680, %v677
    %v789 = vpack.c.b16 %v681, %v678
    %v790 = vpack.c.b16 %v685, %v682
    %v791 = vpack.c.b16 %v686, %v683
    %v792 = vpack.c.b16 %v687, %v684
    %v793 = vpack.c.b16 %v691, %v688
    %v794 = vpack.c.b16 %v692, %v689
    %v795 = vpack.c.b16 %v693, %v690
    %v796 = vpack.c.b16 %v697, %v694
    %v797 = vpack.c.b16 %v698, %v695
    %v798 = vpack.c.b16 %v699, %v696
    %v799 = vpack.c.b16 %v703, %v700
    %v800 = vpack.c.b16 %v704, %v701
    %v801 = vpack.c.b16 %v705, %v702
    %v802 = vpack.c.b16 %v709, %v706
    %v803 = vpack.c.b16 %v710, %v707
    %v804 = vpack.c.b16 %v711, %v708
    %v805 = vpack.c.b16 %v715, %v712
    %v806 = vpack.c.b16 %v716, %v713
    %v807 = vpack.c.b16 %v717, %v714
    %v808 = vpack.c.b16 %v721, %v718
    %v809 = vpack.c.b16 %v722, %v719
    %v810 = vpack.c.b16 %v723, %v720
    %v811 = vpack.c.b16 %v727, %v724
    %v812 = vpack.c.b16 %v728, %v725
    %v813 = vpack.c.b16 %v729, %v726
    %v814 = vpack.c.b16 %v733, %v730
    %v815 = vpack.c.b16 %v734, %v731
    %v816 = vpack.c.b16 %v735, %v732
    %v817 = vpack.c.b16 %v739, %v736
    %v818 = vpack.c.b16 %v740, %v737
    %v819 = vpack.c.b16 %v741, %v738
    %v820 = vpack.c.b16 %v745, %v742
    %v821 = vpack.c.b16 %v746, %v743
    %v822 = vpack.c.b16 %v747, %v744
    %v823 = vpack.c.b16 %v751, %v748
    %v824 = vpack.c.b16 %v752, %v749
    %v825 = vpack.c.b16 %v753, %v750
    %898 = vmatprep.subr.bf16.mxu0 %v755
    %899 = vmatpush1.bf16.msra.mxu0 %v754
    %900 = vmatprep.subr.bf16.mxu0 %v758
    %901 = vmatpush1.bf16.msra.mxu0 %v757
    %902 = vmatprep.subr.bf16.mxu0 %v761
    %903 = vmatpush1.bf16.msra.mxu0 %v760
    %904 = vmatprep.subr.bf16.mxu0 %v764
    %905 = vmatpush1.bf16.msra.mxu0 %v763
    %906 = vmatprep.subr.bf16.mxu0 %v767
    %907 = vmatpush1.bf16.msra.mxu0 %v766
    %908 = vmatprep.subr.bf16.mxu0 %v770
    %909 = vmatpush1.bf16.msra.mxu0 %v769
    %910 = vmatprep.subr.bf16.mxu0 %v773
    %911 = vmatpush1.bf16.msra.mxu0 %v772
    %912 = vmatprep.subr.bf16.mxu0 %v776
    %913 = vmatpush1.bf16.msra.mxu0 %v775
    %914 = vmatprep.subr.bf16.mxu0 %v779
    %915 = vmatpush1.bf16.msra.mxu0 %v778
    %916 = vmatprep.subr.bf16.mxu0 %v782
    %917 = vmatpush1.bf16.msra.mxu0 %v781
    %918 = vmatprep.subr.bf16.mxu0 %v785
    %919 = vmatpush1.bf16.msra.mxu0 %v784
    %920 = vmatprep.subr.bf16.mxu0 %v788
    %921 = vmatpush1.bf16.msra.mxu0 %v787
    %922 = vmatprep.subr.bf16.mxu0 %v791
    %923 = vmatpush1.bf16.msra.mxu0 %v790
    %924 = vmatprep.subr.bf16.mxu0 %v794
    %925 = vmatpush1.bf16.msra.mxu0 %v793
    %926 = vmatprep.subr.bf16.mxu0 %v797
    %927 = vmatpush1.bf16.msra.mxu0 %v796
    %928 = vmatprep.subr.bf16.mxu0 %v800
    %929 = vmatpush1.bf16.msra.mxu0 %v799
    %930 = vmatprep.mubr.bf16.mxu0 %v399
    %931 = vmatmul.mubr.bf16.gmra.mrb[0].mxu0 %v398
    %v932 = vpop.f32.mrb[0].mxu0
    %v933 = vadd.f32 %v502, %v932
    %v934 = vpop.f32.mrb[0].mxu0
    %v935 = vadd.f32 %v506, %v934
    %v936 = vpop.f32.mrb[0].mxu0
    %v937 = vadd.f32 %v502, %v936
    %v938 = vpop.f32.mrb[0].mxu0
    %v939 = vadd.f32 %v506, %v938
    %940 = vdwg.mxu0
    %941 = vmatprep.subr.bf16.mxu0 %v803
    %942 = vmatpush1.bf16.msra.mxu0 %v802
    %943 = vmatprep.subr.bf16.mxu0 %v806
    %944 = vmatpush1.bf16.msra.mxu0 %v805
    %945 = vmatprep.subr.bf16.mxu0 %v809
    %946 = vmatpush1.bf16.msra.mxu0 %v808
    %947 = vmatprep.subr.bf16.mxu0 %v812
    %948 = vmatpush1.bf16.msra.mxu0 %v811
    %949 = vmatprep.subr.bf16.mxu0 %v815
    %950 = vmatpush1.bf16.msra.mxu0 %v814
    %951 = vmatprep.subr.bf16.mxu0 %v818
    %952 = vmatpush1.bf16.msra.mxu0 %v817
    %953 = vmatprep.subr.bf16.mxu0 %v821
    %954 = vmatpush1.bf16.msra.mxu0 %v820
    %955 = vmatprep.subr.bf16.mxu0 %v824
    %956 = vmatpush1.bf16.msra.mxu0 %v823
    %957 = vmatprep.subr.bf16.mxu0 0
    %958 = vmatpush1.bf16.msra.mxu0 0
    %959 = vmatprep.subr.bf16.mxu0 0
    %960 = vmatpush1.bf16.msra.mxu0 0
    %961 = vmatprep.subr.bf16.mxu0 0
    %962 = vmatpush1.bf16.msra.mxu0 0
    %963 = vmatprep.subr.bf16.mxu0 0
    %964 = vmatpush1.bf16.msra.mxu0 0
    %965 = vmatprep.subr.bf16.mxu0 0
    %966 = vmatpush1.bf16.msra.mxu0 0
    %967 = vmatprep.subr.bf16.mxu0 0
    %968 = vmatpush1.bf16.msra.mxu0 0
    %969 = vmatprep.subr.bf16.mxu0 0
    %970 = vmatpush1.bf16.msra.mxu0 0
    %971 = vmatprep.subr.bf16.mxu0 0
    %972 = vmatpush1.bf16.msra.mxu0 0
    %973 = vmatprep.mubr.bf16.mxu0 0
    %974 = vmatmul.mubr.bf16.gmra.mrb[0].mxu0 %v400
    %v975 = vpop.f32.mrb[0].mxu0
    %v976 = vadd.f32 %v933, %v975
    %v977 = vpop.f32.mrb[0].mxu0
    %v978 = vadd.f32 %v935, %v977
    %v979 = vpop.f32.mrb[0].mxu0
    %v980 = vadd.f32 %v937, %v979
    %v981 = vpop.f32.mrb[0].mxu0
    %v982 = vadd.f32 %v939, %v981
    %983 = vdwg.mxu0
    %984 = vmatprep.subr.bf16.mxu0 0
    %985 = vmatpush1.bf16.msra.mxu0 %v756
    %986 = vmatprep.subr.bf16.mxu0 0
    %987 = vmatpush1.bf16.msra.mxu0 %v759
    %988 = vmatprep.subr.bf16.mxu0 0
    %989 = vmatpush1.bf16.msra.mxu0 %v762
    %990 = vmatprep.subr.bf16.mxu0 0
    %991 = vmatpush1.bf16.msra.mxu0 %v765
    %992 = vmatprep.subr.bf16.mxu0 0
    %993 = vmatpush1.bf16.msra.mxu0 %v768
    %994 = vmatprep.subr.bf16.mxu0 0
    %995 = vmatpush1.bf16.msra.mxu0 %v771
    %996 = vmatprep.subr.bf16.mxu0 0
    %997 = vmatpush1.bf16.msra.mxu0 %v774
    %998 = vmatprep.subr.bf16.mxu0 0
    %999 = vmatpush1.bf16.msra.mxu0 %v777
    %1000 = vmatprep.subr.bf16.mxu0 0
    %1001 = vmatpush1.bf16.msra.mxu0 %v780
    %1002 = vmatprep.subr.bf16.mxu0 0
    %1003 = vmatpush1.bf16.msra.mxu0 %v783
    %1004 = vmatprep.subr.bf16.mxu0 0
    %1005 = vmatpush1.bf16.msra.mxu0 %v786
    %1006 = vmatprep.subr.bf16.mxu0 0
    %1007 = vmatpush1.bf16.msra.mxu0 %v789
    %1008 = vmatprep.subr.bf16.mxu0 0
    %1009 = vmatpush1.bf16.msra.mxu0 %v792
    %1010 = vmatprep.subr.bf16.mxu0 0
    %1011 = vmatpush1.bf16.msra.mxu0 %v795
    %1012 = vmatprep.subr.bf16.mxu0 0
    %1013 = vmatpush1.bf16.msra.mxu0 %v798
    %1014 = vmatprep.subr.bf16.mxu0 0
    %1015 = vmatpush1.bf16.msra.mxu0 %v801
    %1016 = vmatprep.mubr.bf16.mxu0 %v399
    %1017 = vmatmul.mubr.bf16.gmra.mrb[0].mxu0 %v398
    %v1018 = vpop.f32.mrb[0].mxu0
    %v1019 = vadd.f32 %v510, %v1018
    %v1020 = vpop.f32.mrb[0].mxu0
    %v1021 = vpop.f32.mrb[0].mxu0
    %v1022 = vadd.f32 %v510, %v1021
    %v1023 = vpop.f32.mrb[0].mxu0
    %1024 = vdwg.mxu0
    %1025 = vmatprep.subr.bf16.mxu0 0
    %1026 = vmatpush1.bf16.msra.mxu0 %v804
    %1027 = vmatprep.subr.bf16.mxu0 0
    %1028 = vmatpush1.bf16.msra.mxu0 %v807
    %1029 = vmatprep.subr.bf16.mxu0 0
    %1030 = vmatpush1.bf16.msra.mxu0 %v810
    %1031 = vmatprep.subr.bf16.mxu0 0
    %1032 = vmatpush1.bf16.msra.mxu0 %v813
    %1033 = vmatprep.subr.bf16.mxu0 0
    %1034 = vmatpush1.bf16.msra.mxu0 %v816
    %1035 = vmatprep.subr.bf16.mxu0 0
    %1036 = vmatpush1.bf16.msra.mxu0 %v819
    %1037 = vmatprep.subr.bf16.mxu0 0
    %1038 = vmatpush1.bf16.msra.mxu0 %v822
    %1039 = vmatprep.subr.bf16.mxu0 0
    %1040 = vmatpush1.bf16.msra.mxu0 %v825
    %1041 = vmatprep.subr.bf16.mxu0 0
    %1042 = vmatpush1.bf16.msra.mxu0 0
    %1043 = vmatprep.subr.bf16.mxu0 0
    %1044 = vmatpush1.bf16.msra.mxu0 0
    %1045 = vmatprep.subr.bf16.mxu0 0
    %1046 = vmatpush1.bf16.msra.mxu0 0
    %1047 = vmatprep.subr.bf16.mxu0 0
    %1048 = vmatpush1.bf16.msra.mxu0 0
    %1049 = vmatprep.subr.bf16.mxu0 0
    %1050 = vmatpush1.bf16.msra.mxu0 0
    %1051 = vmatprep.subr.bf16.mxu0 0
    %1052 = vmatpush1.bf16.msra.mxu0 0
    %1053 = vmatprep.subr.bf16.mxu0 0
    %1054 = vmatpush1.bf16.msra.mxu0 0
    %1055 = vmatprep.subr.bf16.mxu0 0
    %1056 = vmatpush1.bf16.msra.mxu0 0
    %1057 = vmatprep.mubr.bf16.mxu0 0
    %1058 = vmatmul.mubr.bf16.gmra.mrb[0].mxu0 %v400
    %v1059 = vpop.f32.mrb[0].mxu0
    %v1060 = vadd.f32 %v1019, %v1059
    %v1061 = vpop.f32.mrb[0].mxu0
    %v1062 = vpop.f32.mrb[0].mxu0
    %v1063 = vadd.f32 %v1022, %v1062
    %v1064 = vpop.f32.mrb[0].mxu0
    %1065 = vdwg.mxu0
    %v1066 = vmax.f32 %v976, 0.0
    %v1067 = vmax.f32 %v978, 0.0
    %v1068 = vmax.f32 %v1060, 0.0
    %v1069 = vmax.f32 %v980, 0.0
    %v1070 = vmax.f32 %v982, 0.0
    %v1071 = vmax.f32 %v1063, 0.0
    %v1072 = vpack.c.bf16 %v1069, %v1066
    %v1073 = vpack.c.bf16 %v1070, %v1067
    %v1074 = vpack.c.bf16 %v1071, %v1068
    %v1075 = vld [vmem:[#allocation7] sm:$0xff]
    %v1076 = vld [vmem:[#allocation7 + $0x8] sm:$0xf]
    %v1077 = vld [vmem:[#allocation7 + $0xc] sm:$0xff]
    %v1078 = vld [vmem:[#allocation7 + $0x14] sm:$0xf]
    %v1079 = vld [vmem:[#allocation7 + $0x18] sm:$0xff]
    %v1080 = vld [vmem:[#allocation7 + $0x20] sm:$0xf]
    %v1081 = vld [vmem:[#allocation7 + $0x24] sm:$0xff]
    %v1082 = vld [vmem:[#allocation7 + $0x2c] sm:$0xf]
    %v1083 = vld [vmem:[#allocation7 + $0x30] sm:$0xff]
    %v1084 = vld [vmem:[#allocation7 + $0x38] sm:$0xf]
    %v1085 = vld [vmem:[#allocation7 + $0x3c] sm:$0xff]
    %v1086 = vld [vmem:[#allocation7 + $0x44] sm:$0xf]
    %v1087 = vld [vmem:[#allocation7 + $0x48] sm:$0xff]
    %v1088 = vld [vmem:[#allocation7 + $0x50] sm:$0xf]
    %v1089 = vld [vmem:[#allocation7 + $0x54] sm:$0xff]
    %v1090 = vld [vmem:[#allocation7 + $0x5c] sm:$0xf]
    %v1091 = vld [vmem:[#allocation7 + $0x60] sm:$0xff]
    %v1092 = vld [vmem:[#allocation7 + $0x68] sm:$0xf]
    %v1093 = vld [vmem:[#allocation7 + $0x6c] sm:$0xff]
    %v1094 = vld [vmem:[#allocation7 + $0x74] sm:$0xf]
    %v1095 = vld [vmem:[#allocation7 + $0x78] sm:$0xff]
    %v1096 = vld [vmem:[#allocation7 + $0x80] sm:$0xf]
    %v1097 = vld [vmem:[#allocation7 + $0x84] sm:$0xff]
    %v1098 = vld [vmem:[#allocation7 + $0x8c] sm:$0xf]
    %v1099 = vld [vmem:[#allocation7 + $0x90] sm:$0xff]
    %v1100 = vld [vmem:[#allocation7 + $0x98] sm:$0xf]
    %v1101 = vld [vmem:[#allocation7 + $0x9c] sm:$0xff]
    %v1102 = vld [vmem:[#allocation7 + $0xa4] sm:$0xf]
    %v1103 = vld [vmem:[#allocation7 + $0xa8] sm:$0xff]
    %v1104 = vld [vmem:[#allocation7 + $0xb0] sm:$0xf]
    %v1105 = vld [vmem:[#allocation7 + $0xb4] sm:$0xff]
    %v1106 = vld [vmem:[#allocation7 + $0xbc] sm:$0xf]
    %v1107 = vld [vmem:[#allocation7 + $0xc0] sm:$0xff]
    %v1108 = vld [vmem:[#allocation7 + $0xc8] sm:$0xf]
    %v1109 = vld [vmem:[#allocation7 + $0xcc] sm:$0xff]
    %v1110 = vld [vmem:[#allocation7 + $0xd4] sm:$0xf]
    %v1111 = vld [vmem:[#allocation7 + $0xd8] sm:$0xff]
    %v1112 = vld [vmem:[#allocation7 + $0xe0] sm:$0xf]
    %v1113 = vld [vmem:[#allocation7 + $0xe4] sm:$0xff]
    %v1114 = vld [vmem:[#allocation7 + $0xec] sm:$0xf]
    %v1115 = vld [vmem:[#allocation7 + $0xf0] sm:$0xff]
    %v1116 = vld [vmem:[#allocation7 + $0xf8] sm:$0xf]
    %v1117 = vld [vmem:[#allocation7 + $0xfc] sm:$0xff]
    %v1118 = vld [vmem:[#allocation7 + $0x104] sm:$0xf]
    %v1119 = vld [vmem:[#allocation7 + $0x108] sm:$0xff]
    %v1120 = vld [vmem:[#allocation7 + $0x110] sm:$0xf]
    %v1121 = vld [vmem:[#allocation7 + $0x114] sm:$0xff]
    %v1122 = vld [vmem:[#allocation7 + $0x11c] sm:$0xf]
    %v1123 = vld [vmem:[#allocation7 + $0x120] sm:$0xff]
    %v1124 = vld [vmem:[#allocation7 + $0x128] sm:$0xf]
    %v1125 = vld [vmem:[#allocation7 + $0x12c] sm:$0xff]
    %v1126 = vld [vmem:[#allocation7 + $0x134] sm:$0xf]
    %v1127 = vld [vmem:[#allocation7 + $0x138] sm:$0xff]
    %v1128 = vld [vmem:[#allocation7 + $0x140] sm:$0xf]
    %v1129 = vld [vmem:[#allocation7 + $0x144] sm:$0xff]
    %v1130 = vld [vmem:[#allocation7 + $0x14c] sm:$0xf]
    %v1131 = vld [vmem:[#allocation7 + $0x150] sm:$0xff]
    %v1132 = vld [vmem:[#allocation7 + $0x158] sm:$0xf]
    %v1133 = vld [vmem:[#allocation7 + $0x15c] sm:$0xff]
    %v1134 = vld [vmem:[#allocation7 + $0x164] sm:$0xf]
    %v1135 = vld [vmem:[#allocation7 + $0x168] sm:$0xff]
    %v1136 = vld [vmem:[#allocation7 + $0x170] sm:$0xf]
    %v1137 = vld [vmem:[#allocation7 + $0x174] sm:$0xff]
    %v1138 = vld [vmem:[#allocation7 + $0x17c] sm:$0xf]
    %v1139 = vld [vmem:[#allocation7 + $0x180] sm:$0xff]
    %v1140 = vld [vmem:[#allocation7 + $0x188] sm:$0xf]
    %v1141 = vld [vmem:[#allocation7 + $0x18c] sm:$0xff]
    %v1142 = vld [vmem:[#allocation7 + $0x194] sm:$0xf]
    %v1143 = vld [vmem:[#allocation7 + $0x198] sm:$0xff]
    %v1144 = vld [vmem:[#allocation7 + $0x1a0] sm:$0xf]
    %v1145 = vld [vmem:[#allocation7 + $0x1a4] sm:$0xff]
    %v1146 = vld [vmem:[#allocation7 + $0x1ac] sm:$0xf]
    %v1147 = vld [vmem:[#allocation7 + $0x1b0] sm:$0xff]
    %v1148 = vld [vmem:[#allocation7 + $0x1b8] sm:$0xf]
    %v1149 = vld [vmem:[#allocation7 + $0x1bc] sm:$0xff]
    %v1150 = vld [vmem:[#allocation7 + $0x1c4] sm:$0xf]
    %v1151 = vld [vmem:[#allocation7 + $0x1c8] sm:$0xff]
    %v1152 = vld [vmem:[#allocation7 + $0x1d0] sm:$0xf]
    %v1153 = vld [vmem:[#allocation7 + $0x1d4] sm:$0xff]
    %v1154 = vld [vmem:[#allocation7 + $0x1dc] sm:$0xf]
    %v1155 = vld [vmem:[#allocation7 + $0x1e0] sm:$0xff]
    %v1156 = vld [vmem:[#allocation7 + $0x1e8] sm:$0xf]
    %v1157 = vld [vmem:[#allocation7 + $0x1ec] sm:$0xff]
    %v1158 = vld [vmem:[#allocation7 + $0x1f4] sm:$0xf]
    %v1159 = vld [vmem:[#allocation7 + $0x1f8] sm:$0xff]
    %v1160 = vld [vmem:[#allocation7 + $0x200] sm:$0xf]
    %v1161 = vld [vmem:[#allocation7 + $0x204] sm:$0xff]
    %v1162 = vld [vmem:[#allocation7 + $0x20c] sm:$0xf]
    %v1163 = vld [vmem:[#allocation7 + $0x210] sm:$0xff]
    %v1164 = vld [vmem:[#allocation7 + $0x218] sm:$0xf]
    %v1165 = vld [vmem:[#allocation7 + $0x21c] sm:$0xff]
    %v1166 = vld [vmem:[#allocation7 + $0x224] sm:$0xf]
    %v1167 = vld [vmem:[#allocation7 + $0x228] sm:$0xff]
    %v1168 = vld [vmem:[#allocation7 + $0x230] sm:$0xf]
    %v1169 = vld [vmem:[#allocation7 + $0x234] sm:$0xff]
    %v1170 = vld [vmem:[#allocation7 + $0x23c] sm:$0xf]
    %v1171 = vld [vmem:[%s6] sm:$0x7]
    %v1173 = vlaneseq
    %v1174 = vshrl.u32 %v1173, 7
    %v1175 = vsub.s32 0, %v1174
    %v1176 = vrot.slane %v1171, %v1175
    %v1177 = vlaneseq
    %v1178 = vshrl.u32 %v1177, 7
    %v1179 = vsub.s32 1, %v1178
    %v1180 = vrot.slane %v1171, %v1179
    %v1181 = vlaneseq
    %v1182 = vshrl.u32 %v1181, 7
    %v1183 = vsub.s32 2, %v1182
    %v1184 = vrot.slane %v1171, %v1183
    %v1284 = vunpack.c.l.b16 %v1075
    %v1285 = vunpack.c.h.b16 %v1075
    %v1286 = vunpack.c.l.b16 %v1076
    %v1287 = vunpack.c.l.b16 %v1077
    %v1288 = vunpack.c.h.b16 %v1077
    %v1289 = vunpack.c.l.b16 %v1078
    %v1290 = vunpack.c.l.b16 %v1079
    %v1291 = vunpack.c.h.b16 %v1079
    %v1292 = vunpack.c.l.b16 %v1080
    %v1293 = vunpack.c.l.b16 %v1081
    %v1294 = vunpack.c.h.b16 %v1081
    %v1295 = vunpack.c.l.b16 %v1082
    %v1296 = vunpack.c.l.b16 %v1083
    %v1297 = vunpack.c.h.b16 %v1083
    %v1298 = vunpack.c.l.b16 %v1084
    %v1299 = vunpack.c.l.b16 %v1085
    %v1300 = vunpack.c.h.b16 %v1085
    %v1301 = vunpack.c.l.b16 %v1086
    %v1302 = vunpack.c.l.b16 %v1087
    %v1303 = vunpack.c.h.b16 %v1087
    %v1304 = vunpack.c.l.b16 %v1088
    %v1305 = vunpack.c.l.b16 %v1089
    %v1306 = vunpack.c.h.b16 %v1089
    %v1307 = vunpack.c.l.b16 %v1090
    %v1308 = vunpack.c.l.b16 %v1091
    %v1309 = vunpack.c.h.b16 %v1091
    %v1310 = vunpack.c.l.b16 %v1092
    %v1311 = vunpack.c.l.b16 %v1093
    %v1312 = vunpack.c.h.b16 %v1093
    %v1313 = vunpack.c.l.b16 %v1094
    %v1314 = vunpack.c.l.b16 %v1095
    %v1315 = vunpack.c.h.b16 %v1095
    %v1316 = vunpack.c.l.b16 %v1096
    %v1317 = vunpack.c.l.b16 %v1097
    %v1318 = vunpack.c.h.b16 %v1097
    %v1319 = vunpack.c.l.b16 %v1098
    %v1320 = vunpack.c.l.b16 %v1099
    %v1321 = vunpack.c.h.b16 %v1099
    %v1322 = vunpack.c.l.b16 %v1100
    %v1323 = vunpack.c.l.b16 %v1101
    %v1324 = vunpack.c.h.b16 %v1101
    %v1325 = vunpack.c.l.b16 %v1102
    %v1326 = vunpack.c.l.b16 %v1103
    %v1327 = vunpack.c.h.b16 %v1103
    %v1328 = vunpack.c.l.b16 %v1104
    %v1329 = vunpack.c.l.b16 %v1105
    %v1330 = vunpack.c.h.b16 %v1105
    %v1331 = vunpack.c.l.b16 %v1106
    %v1332 = vunpack.c.l.b16 %v1107
    %v1333 = vunpack.c.h.b16 %v1107
    %v1334 = vunpack.c.l.b16 %v1108
    %v1335 = vunpack.c.l.b16 %v1109
    %v1336 = vunpack.c.h.b16 %v1109
    %v1337 = vunpack.c.l.b16 %v1110
    %v1338 = vunpack.c.l.b16 %v1111
    %v1339 = vunpack.c.h.b16 %v1111
    %v1340 = vunpack.c.l.b16 %v1112
    %v1341 = vunpack.c.l.b16 %v1113
    %v1342 = vunpack.c.h.b16 %v1113
    %v1343 = vunpack.c.l.b16 %v1114
    %v1344 = vunpack.c.l.b16 %v1115
    %v1345 = vunpack.c.h.b16 %v1115
    %v1346 = vunpack.c.l.b16 %v1116
    %v1347 = vunpack.c.l.b16 %v1117
    %v1348 = vunpack.c.h.b16 %v1117
    %v1349 = vunpack.c.l.b16 %v1118
    %v1350 = vunpack.c.l.b16 %v1119
    %v1351 = vunpack.c.h.b16 %v1119
    %v1352 = vunpack.c.l.b16 %v1120
    %v1353 = vunpack.c.l.b16 %v1121
    %v1354 = vunpack.c.h.b16 %v1121
    %v1355 = vunpack.c.l.b16 %v1122
    %v1356 = vunpack.c.l.b16 %v1123
    %v1357 = vunpack.c.h.b16 %v1123
    %v1358 = vunpack.c.l.b16 %v1124
    %v1359 = vunpack.c.l.b16 %v1125
    %v1360 = vunpack.c.h.b16 %v1125
    %v1361 = vunpack.c.l.b16 %v1126
    %v1362 = vunpack.c.l.b16 %v1127
    %v1363 = vunpack.c.h.b16 %v1127
    %v1364 = vunpack.c.l.b16 %v1128
    %v1365 = vunpack.c.l.b16 %v1129
    %v1366 = vunpack.c.h.b16 %v1129
    %v1367 = vunpack.c.l.b16 %v1130
    %v1368 = vunpack.c.l.b16 %v1131
    %v1369 = vunpack.c.h.b16 %v1131
    %v1370 = vunpack.c.l.b16 %v1132
    %v1371 = vunpack.c.l.b16 %v1133
    %v1372 = vunpack.c.h.b16 %v1133
    %v1373 = vunpack.c.l.b16 %v1134
    %v1374 = vunpack.c.l.b16 %v1135
    %v1375 = vunpack.c.h.b16 %v1135
    %v1376 = vunpack.c.l.b16 %v1136
    %v1377 = vunpack.c.l.b16 %v1137
    %v1378 = vunpack.c.h.b16 %v1137
    %v1379 = vunpack.c.l.b16 %v1138
    %v1380 = vunpack.c.l.b16 %v1139
    %v1381 = vunpack.c.h.b16 %v1139
    %v1382 = vunpack.c.l.b16 %v1140
    %v1383 = vunpack.c.l.b16 %v1141
    %v1384 = vunpack.c.h.b16 %v1141
    %v1385 = vunpack.c.l.b16 %v1142
    %v1386 = vunpack.c.l.b16 %v1143
    %v1387 = vunpack.c.h.b16 %v1143
    %v1388 = vunpack.c.l.b16 %v1144
    %v1389 = vunpack.c.l.b16 %v1145
    %v1390 = vunpack.c.h.b16 %v1145
    %v1391 = vunpack.c.l.b16 %v1146
    %v1392 = vunpack.c.l.b16 %v1147
    %v1393 = vunpack.c.h.b16 %v1147
    %v1394 = vunpack.c.l.b16 %v1148
    %v1395 = vunpack.c.l.b16 %v1149
    %v1396 = vunpack.c.h.b16 %v1149
    %v1397 = vunpack.c.l.b16 %v1150
    %v1398 = vunpack.c.l.b16 %v1151
    %v1399 = vunpack.c.h.b16 %v1151
    %v1400 = vunpack.c.l.b16 %v1152
    %v1401 = vunpack.c.l.b16 %v1153
    %v1402 = vunpack.c.h.b16 %v1153
    %v1403 = vunpack.c.l.b16 %v1154
    %v1404 = vunpack.c.l.b16 %v1155
    %v1405 = vunpack.c.h.b16 %v1155
    %v1406 = vunpack.c.l.b16 %v1156
    %v1407 = vunpack.c.l.b16 %v1157
    %v1408 = vunpack.c.h.b16 %v1157
    %v1409 = vunpack.c.l.b16 %v1158
    %v1410 = vunpack.c.l.b16 %v1159
    %v1411 = vunpack.c.h.b16 %v1159
    %v1412 = vunpack.c.l.b16 %v1160
    %v1413 = vunpack.c.l.b16 %v1161
    %v1414 = vunpack.c.h.b16 %v1161
    %v1415 = vunpack.c.l.b16 %v1162
    %v1416 = vunpack.c.l.b16 %v1163
    %v1417 = vunpack.c.h.b16 %v1163
    %v1418 = vunpack.c.l.b16 %v1164
    %v1419 = vunpack.c.l.b16 %v1165
    %v1420 = vunpack.c.h.b16 %v1165
    %v1421 = vunpack.c.l.b16 %v1166
    %v1422 = vunpack.c.l.b16 %v1167
    %v1423 = vunpack.c.h.b16 %v1167
    %v1424 = vunpack.c.l.b16 %v1168
    %v1425 = vunpack.c.l.b16 %v1169
    %v1426 = vunpack.c.h.b16 %v1169
    %v1427 = vunpack.c.l.b16 %v1170
    %v1428 = vpack.c.b16 %v1287, %v1284
    %v1429 = vpack.c.b16 %v1288, %v1285
    %v1430 = vpack.c.b16 %v1289, %v1286
    %v1431 = vpack.c.b16 %v1293, %v1290
    %v1432 = vpack.c.b16 %v1294, %v1291
    %v1433 = vpack.c.b16 %v1295, %v1292
    %v1434 = vpack.c.b16 %v1299, %v1296
    %v1435 = vpack.c.b16 %v1300, %v1297
    %v1436 = vpack.c.b16 %v1301, %v1298
    %v1437 = vpack.c.b16 %v1305, %v1302
    %v1438 = vpack.c.b16 %v1306, %v1303
    %v1439 = vpack.c.b16 %v1307, %v1304
    %v1440 = vpack.c.b16 %v1311, %v1308
    %v1441 = vpack.c.b16 %v1312, %v1309
    %v1442 = vpack.c.b16 %v1313, %v1310
    %v1443 = vpack.c.b16 %v1317, %v1314
    %v1444 = vpack.c.b16 %v1318, %v1315
    %v1445 = vpack.c.b16 %v1319, %v1316
    %v1446 = vpack.c.b16 %v1323, %v1320
    %v1447 = vpack.c.b16 %v1324, %v1321
    %v1448 = vpack.c.b16 %v1325, %v1322
    %v1449 = vpack.c.b16 %v1329, %v1326
    %v1450 = vpack.c.b16 %v1330, %v1327
    %v1451 = vpack.c.b16 %v1331, %v1328
    %v1452 = vpack.c.b16 %v1335, %v1332
    %v1453 = vpack.c.b16 %v1336, %v1333
    %v1454 = vpack.c.b16 %v1337, %v1334
    %v1455 = vpack.c.b16 %v1341, %v1338
    %v1456 = vpack.c.b16 %v1342, %v1339
    %v1457 = vpack.c.b16 %v1343, %v1340
    %v1458 = vpack.c.b16 %v1347, %v1344
    %v1459 = vpack.c.b16 %v1348, %v1345
    %v1460 = vpack.c.b16 %v1349, %v1346
    %v1461 = vpack.c.b16 %v1353, %v1350
    %v1462 = vpack.c.b16 %v1354, %v1351
    %v1463 = vpack.c.b16 %v1355, %v1352
    %v1464 = vpack.c.b16 %v1359, %v1356
    %v1465 = vpack.c.b16 %v1360, %v1357
    %v1466 = vpack.c.b16 %v1361, %v1358
    %v1467 = vpack.c.b16 %v1365, %v1362
    %v1468 = vpack.c.b16 %v1366, %v1363
    %v1469 = vpack.c.b16 %v1367, %v1364
    %v1470 = vpack.c.b16 %v1371, %v1368
    %v1471 = vpack.c.b16 %v1372, %v1369
    %v1472 = vpack.c.b16 %v1373, %v1370
    %v1473 = vpack.c.b16 %v1377, %v1374
    %v1474 = vpack.c.b16 %v1378, %v1375
    %v1475 = vpack.c.b16 %v1379, %v1376
    %v1476 = vpack.c.b16 %v1383, %v1380
    %v1477 = vpack.c.b16 %v1384, %v1381
    %v1478 = vpack.c.b16 %v1385, %v1382
    %v1479 = vpack.c.b16 %v1389, %v1386
    %v1480 = vpack.c.b16 %v1390, %v1387
    %v1481 = vpack.c.b16 %v1391, %v1388
    %v1482 = vpack.c.b16 %v1395, %v1392
    %v1483 = vpack.c.b16 %v1396, %v1393
    %v1484 = vpack.c.b16 %v1397, %v1394
    %v1485 = vpack.c.b16 %v1401, %v1398
    %v1486 = vpack.c.b16 %v1402, %v1399
    %v1487 = vpack.c.b16 %v1403, %v1400
    %v1488 = vpack.c.b16 %v1407, %v1404
    %v1489 = vpack.c.b16 %v1408, %v1405
    %v1490 = vpack.c.b16 %v1409, %v1406
    %v1491 = vpack.c.b16 %v1413, %v1410
    %v1492 = vpack.c.b16 %v1414, %v1411
    %v1493 = vpack.c.b16 %v1415, %v1412
    %v1494 = vpack.c.b16 %v1419, %v1416
    %v1495 = vpack.c.b16 %v1420, %v1417
    %v1496 = vpack.c.b16 %v1421, %v1418
    %v1497 = vpack.c.b16 %v1425, %v1422
    %v1498 = vpack.c.b16 %v1426, %v1423
    %v1499 = vpack.c.b16 %v1427, %v1424
    %1572 = vmatprep.subr.bf16.mxu0 %v1429
    %1573 = vmatpush1.bf16.msra.mxu0 %v1428
    %1574 = vmatprep.subr.bf16.mxu0 %v1432
    %1575 = vmatpush1.bf16.msra.mxu0 %v1431
    %1576 = vmatprep.subr.bf16.mxu0 %v1435
    %1577 = vmatpush1.bf16.msra.mxu0 %v1434
    %1578 = vmatprep.subr.bf16.mxu0 %v1438
    %1579 = vmatpush1.bf16.msra.mxu0 %v1437
    %1580 = vmatprep.subr.bf16.mxu0 %v1441
    %1581 = vmatpush1.bf16.msra.mxu0 %v1440
    %1582 = vmatprep.subr.bf16.mxu0 %v1444
    %1583 = vmatpush1.bf16.msra.mxu0 %v1443
    %1584 = vmatprep.subr.bf16.mxu0 %v1447
    %1585 = vmatpush1.bf16.msra.mxu0 %v1446
    %1586 = vmatprep.subr.bf16.mxu0 %v1450
    %1587 = vmatpush1.bf16.msra.mxu0 %v1449
    %1588 = vmatprep.subr.bf16.mxu0 %v1453
    %1589 = vmatpush1.bf16.msra.mxu0 %v1452
    %1590 = vmatprep.subr.bf16.mxu0 %v1456
    %1591 = vmatpush1.bf16.msra.mxu0 %v1455
    %1592 = vmatprep.subr.bf16.mxu0 %v1459
    %1593 = vmatpush1.bf16.msra.mxu0 %v1458
    %1594 = vmatprep.subr.bf16.mxu0 %v1462
    %1595 = vmatpush1.bf16.msra.mxu0 %v1461
    %1596 = vmatprep.subr.bf16.mxu0 %v1465
    %1597 = vmatpush1.bf16.msra.mxu0 %v1464
    %1598 = vmatprep.subr.bf16.mxu0 %v1468
    %1599 = vmatpush1.bf16.msra.mxu0 %v1467
    %1600 = vmatprep.subr.bf16.mxu0 %v1471
    %1601 = vmatpush1.bf16.msra.mxu0 %v1470
    %1602 = vmatprep.subr.bf16.mxu0 %v1474
    %1603 = vmatpush1.bf16.msra.mxu0 %v1473
    %1604 = vmatprep.mubr.bf16.mxu0 %v1073
    %1605 = vmatmul.mubr.bf16.gmra.mrb[0].mxu0 %v1072
    %v1606 = vpop.f32.mrb[0].mxu0
    %v1607 = vadd.f32 %v1176, %v1606
    %v1608 = vpop.f32.mrb[0].mxu0
    %v1609 = vadd.f32 %v1180, %v1608
    %v1610 = vpop.f32.mrb[0].mxu0
    %v1611 = vadd.f32 %v1176, %v1610
    %v1612 = vpop.f32.mrb[0].mxu0
    %v1613 = vadd.f32 %v1180, %v1612
    %1614 = vdwg.mxu0
    %1615 = vmatprep.subr.bf16.mxu0 %v1477
    %1616 = vmatpush1.bf16.msra.mxu0 %v1476
    %1617 = vmatprep.subr.bf16.mxu0 %v1480
    %1618 = vmatpush1.bf16.msra.mxu0 %v1479
    %1619 = vmatprep.subr.bf16.mxu0 %v1483
    %1620 = vmatpush1.bf16.msra.mxu0 %v1482
    %1621 = vmatprep.subr.bf16.mxu0 %v1486
    %1622 = vmatpush1.bf16.msra.mxu0 %v1485
    %1623 = vmatprep.subr.bf16.mxu0 %v1489
    %1624 = vmatpush1.bf16.msra.mxu0 %v1488
    %1625 = vmatprep.subr.bf16.mxu0 %v1492
    %1626 = vmatpush1.bf16.msra.mxu0 %v1491
    %1627 = vmatprep.subr.bf16.mxu0 %v1495
    %1628 = vmatpush1.bf16.msra.mxu0 %v1494
    %1629 = vmatprep.subr.bf16.mxu0 %v1498
    %1630 = vmatpush1.bf16.msra.mxu0 %v1497
    %1631 = vmatprep.subr.bf16.mxu0 0
    %1632 = vmatpush1.bf16.msra.mxu0 0
    %1633 = vmatprep.subr.bf16.mxu0 0
    %1634 = vmatpush1.bf16.msra.mxu0 0
    %1635 = vmatprep.subr.bf16.mxu0 0
    %1636 = vmatpush1.bf16.msra.mxu0 0
    %1637 = vmatprep.subr.bf16.mxu0 0
    %1638 = vmatpush1.bf16.msra.mxu0 0
    %1639 = vmatprep.subr.bf16.mxu0 0
    %1640 = vmatpush1.bf16.msra.mxu0 0
    %1641 = vmatprep.subr.bf16.mxu0 0
    %1642 = vmatpush1.bf16.msra.mxu0 0
    %1643 = vmatprep.subr.bf16.mxu0 0
    %1644 = vmatpush1.bf16.msra.mxu0 0
    %1645 = vmatprep.subr.bf16.mxu0 0
    %1646 = vmatpush1.bf16.msra.mxu0 0
    %1647 = vmatprep.mubr.bf16.mxu0 0
    %1648 = vmatmul.mubr.bf16.gmra.mrb[0].mxu0 %v1074
    %v1649 = vpop.f32.mrb[0].mxu0
    %v1650 = vadd.f32 %v1607, %v1649
    %v1651 = vpop.f32.mrb[0].mxu0
    %v1652 = vadd.f32 %v1609, %v1651
    %v1653 = vpop.f32.mrb[0].mxu0
    %v1654 = vadd.f32 %v1611, %v1653
    %v1655 = vpop.f32.mrb[0].mxu0
    %v1656 = vadd.f32 %v1613, %v1655
    %1657 = vdwg.mxu0
    %1658 = vmatprep.subr.bf16.mxu0 0
    %1659 = vmatpush1.bf16.msra.mxu0 %v1430
    %1660 = vmatprep.subr.bf16.mxu0 0
    %1661 = vmatpush1.bf16.msra.mxu0 %v1433
    %1662 = vmatprep.subr.bf16.mxu0 0
    %1663 = vmatpush1.bf16.msra.mxu0 %v1436
    %1664 = vmatprep.subr.bf16.mxu0 0
    %1665 = vmatpush1.bf16.msra.mxu0 %v1439
    %1666 = vmatprep.subr.bf16.mxu0 0
    %1667 = vmatpush1.bf16.msra.mxu0 %v1442
    %1668 = vmatprep.subr.bf16.mxu0 0
    %1669 = vmatpush1.bf16.msra.mxu0 %v1445
    %1670 = vmatprep.subr.bf16.mxu0 0
    %1671 = vmatpush1.bf16.msra.mxu0 %v1448
    %1672 = vmatprep.subr.bf16.mxu0 0
    %1673 = vmatpush1.bf16.msra.mxu0 %v1451
    %1674 = vmatprep.subr.bf16.mxu0 0
    %1675 = vmatpush1.bf16.msra.mxu0 %v1454
    %1676 = vmatprep.subr.bf16.mxu0 0
    %1677 = vmatpush1.bf16.msra.mxu0 %v1457
    %1678 = vmatprep.subr.bf16.mxu0 0
    %1679 = vmatpush1.bf16.msra.mxu0 %v1460
    %1680 = vmatprep.subr.bf16.mxu0 0
    %1681 = vmatpush1.bf16.msra.mxu0 %v1463
    %1682 = vmatprep.subr.bf16.mxu0 0
    %1683 = vmatpush1.bf16.msra.mxu0 %v1466
    %1684 = vmatprep.subr.bf16.mxu0 0
    %1685 = vmatpush1.bf16.msra.mxu0 %v1469
    %1686 = vmatprep.subr.bf16.mxu0 0
    %1687 = vmatpush1.bf16.msra.mxu0 %v1472
    %1688 = vmatprep.subr.bf16.mxu0 0
    %1689 = vmatpush1.bf16.msra.mxu0 %v1475
    %1690 = vmatprep.mubr.bf16.mxu0 %v1073
    %1691 = vmatmul.mubr.bf16.gmra.mrb[0].mxu0 %v1072
    %v1692 = vpop.f32.mrb[0].mxu0
    %v1693 = vadd.f32 %v1184, %v1692
    %v1694 = vpop.f32.mrb[0].mxu0
    %v1695 = vpop.f32.mrb[0].mxu0
    %v1696 = vadd.f32 %v1184, %v1695
    %v1697 = vpop.f32.mrb[0].mxu0
    %1698 = vdwg.mxu0
    %1699 = vmatprep.subr.bf16.mxu0 0
    %1700 = vmatpush1.bf16.msra.mxu0 %v1478
    %1701 = vmatprep.subr.bf16.mxu0 0
    %1702 = vmatpush1.bf16.msra.mxu0 %v1481
    %1703 = vmatprep.subr.bf16.mxu0 0
    %1704 = vmatpush1.bf16.msra.mxu0 %v1484
    %1705 = vmatprep.subr.bf16.mxu0 0
    %1706 = vmatpush1.bf16.msra.mxu0 %v1487
    %1707 = vmatprep.subr.bf16.mxu0 0
    %1708 = vmatpush1.bf16.msra.mxu0 %v1490
    %1709 = vmatprep.subr.bf16.mxu0 0
    %1710 = vmatpush1.bf16.msra.mxu0 %v1493
    %1711 = vmatprep.subr.bf16.mxu0 0
    %1712 = vmatpush1.bf16.msra.mxu0 %v1496
    %1713 = vmatprep.subr.bf16.mxu0 0
    %1714 = vmatpush1.bf16.msra.mxu0 %v1499
    %1715 = vmatprep.subr.bf16.mxu0 0
    %1716 = vmatpush1.bf16.msra.mxu0 0
    %1717 = vmatprep.subr.bf16.mxu0 0
    %1718 = vmatpush1.bf16.msra.mxu0 0
    %1719 = vmatprep.subr.bf16.mxu0 0
    %1720 = vmatpush1.bf16.msra.mxu0 0
    %1721 = vmatprep.subr.bf16.mxu0 0
    %1722 = vmatpush1.bf16.msra.mxu0 0
    %1723 = vmatprep.subr.bf16.mxu0 0
    %1724 = vmatpush1.bf16.msra.mxu0 0
    %1725 = vmatprep.subr.bf16.mxu0 0
    %1726 = vmatpush1.bf16.msra.mxu0 0
    %1727 = vmatprep.subr.bf16.mxu0 0
    %1728 = vmatpush1.bf16.msra.mxu0 0
    %1729 = vmatprep.subr.bf16.mxu0 0
    %1730 = vmatpush1.bf16.msra.mxu0 0
    %1731 = vmatprep.mubr.bf16.mxu0 0
    %1732 = vmatmul.mubr.bf16.gmra.mrb[0].mxu0 %v1074
    %v1733 = vpop.f32.mrb[0].mxu0
    %v1734 = vadd.f32 %v1693, %v1733
    %v1735 = vpop.f32.mrb[0].mxu0
    %v1736 = vpop.f32.mrb[0].mxu0
    %v1737 = vadd.f32 %v1696, %v1736
    %v1738 = vpop.f32.mrb[0].mxu0
    %1739 = vdwg.mxu0
    %v1740 = vmax.f32 %v1650, 0.0
    %v1741 = vmax.f32 %v1652, 0.0
    %v1742 = vmax.f32 %v1734, 0.0
    %v1743 = vmax.f32 %v1654, 0.0
    %v1744 = vmax.f32 %v1656, 0.0
    %v1745 = vmax.f32 %v1737, 0.0
    %v1746 = vpack.c.bf16 %v1743, %v1740
    %v1747 = vpack.c.bf16 %v1744, %v1741
    %v1748 = vpack.c.bf16 %v1745, %v1742
    %v1749 = vld [vmem:[#allocation8] sm:$0xff]
    %v1750 = vld [vmem:[#allocation8 + $0x8] sm:$0xf]
    %v1751 = vld [vmem:[#allocation8 + $0xc] sm:$0xff]
    %v1752 = vld [vmem:[#allocation8 + $0x14] sm:$0xf]
    %v1753 = vld [vmem:[#allocation8 + $0x18] sm:$0xff]
    %v1754 = vld [vmem:[#allocation8 + $0x20] sm:$0xf]
    %v1755 = vld [vmem:[#allocation8 + $0x24] sm:$0xff]
    %v1756 = vld [vmem:[#allocation8 + $0x2c] sm:$0xf]
    %v1757 = vld [vmem:[#allocation8 + $0x30] sm:$0xff]
    %v1758 = vld [vmem:[#allocation8 + $0x38] sm:$0xf]
    %v1759 = vld [vmem:[#allocation8 + $0x3c] sm:$0xff]
    %v1760 = vld [vmem:[#allocation8 + $0x44] sm:$0xf]
    %v1761 = vld [vmem:[#allocation8 + $0x48] sm:$0xff]
    %v1762 = vld [vmem:[#allocation8 + $0x50] sm:$0xf]
    %v1763 = vld [vmem:[#allocation8 + $0x54] sm:$0xff]
    %v1764 = vld [vmem:[#allocation8 + $0x5c] sm:$0xf]
    %v1765 = vld [vmem:[#allocation8 + $0x60] sm:$0xff]
    %v1766 = vld [vmem:[#allocation8 + $0x68] sm:$0xf]
    %v1767 = vld [vmem:[#allocation8 + $0x6c] sm:$0xff]
    %v1768 = vld [vmem:[#allocation8 + $0x74] sm:$0xf]
    %v1769 = vld [vmem:[#allocation8 + $0x78] sm:$0xff]
    %v1770 = vld [vmem:[#allocation8 + $0x80] sm:$0xf]
    %v1771 = vld [vmem:[#allocation8 + $0x84] sm:$0xff]
    %v1772 = vld [vmem:[#allocation8 + $0x8c] sm:$0xf]
    %v1773 = vld [vmem:[#allocation8 + $0x90] sm:$0xff]
    %v1774 = vld [vmem:[#allocation8 + $0x98] sm:$0xf]
    %v1775 = vld [vmem:[#allocation8 + $0x9c] sm:$0xff]
    %v1776 = vld [vmem:[#allocation8 + $0xa4] sm:$0xf]
    %v1777 = vld [vmem:[#allocation8 + $0xa8] sm:$0xff]
    %v1778 = vld [vmem:[#allocation8 + $0xb0] sm:$0xf]
    %v1779 = vld [vmem:[#allocation8 + $0xb4] sm:$0xff]
    %v1780 = vld [vmem:[#allocation8 + $0xbc] sm:$0xf]
    %v1781 = vld [vmem:[#allocation8 + $0xc0] sm:$0xff]
    %v1782 = vld [vmem:[#allocation8 + $0xc8] sm:$0xf]
    %v1783 = vld [vmem:[#allocation8 + $0xcc] sm:$0xff]
    %v1784 = vld [vmem:[#allocation8 + $0xd4] sm:$0xf]
    %v1785 = vld [vmem:[#allocation8 + $0xd8] sm:$0xff]
    %v1786 = vld [vmem:[#allocation8 + $0xe0] sm:$0xf]
    %v1787 = vld [vmem:[#allocation8 + $0xe4] sm:$0xff]
    %v1788 = vld [vmem:[#allocation8 + $0xec] sm:$0xf]
    %v1789 = vld [vmem:[#allocation8 + $0xf0] sm:$0xff]
    %v1790 = vld [vmem:[#allocation8 + $0xf8] sm:$0xf]
    %v1791 = vld [vmem:[#allocation8 + $0xfc] sm:$0xff]
    %v1792 = vld [vmem:[#allocation8 + $0x104] sm:$0xf]
    %v1793 = vld [vmem:[#allocation8 + $0x108] sm:$0xff]
    %v1794 = vld [vmem:[#allocation8 + $0x110] sm:$0xf]
    %v1795 = vld [vmem:[#allocation8 + $0x114] sm:$0xff]
    %v1796 = vld [vmem:[#allocation8 + $0x11c] sm:$0xf]
    %v1797 = vld [vmem:[#allocation8 + $0x120] sm:$0xff]
    %v1798 = vld [vmem:[#allocation8 + $0x128] sm:$0xf]
    %v1799 = vld [vmem:[#allocation8 + $0x12c] sm:$0xff]
    %v1800 = vld [vmem:[#allocation8 + $0x134] sm:$0xf]
    %v1801 = vld [vmem:[#allocation8 + $0x138] sm:$0xff]
    %v1802 = vld [vmem:[#allocation8 + $0x140] sm:$0xf]
    %v1803 = vld [vmem:[#allocation8 + $0x144] sm:$0xff]
    %v1804 = vld [vmem:[#allocation8 + $0x14c] sm:$0xf]
    %v1805 = vld [vmem:[#allocation8 + $0x150] sm:$0xff]
    %v1806 = vld [vmem:[#allocation8 + $0x158] sm:$0xf]
    %v1807 = vld [vmem:[#allocation8 + $0x15c] sm:$0xff]
    %v1808 = vld [vmem:[#allocation8 + $0x164] sm:$0xf]
    %v1809 = vld [vmem:[#allocation8 + $0x168] sm:$0xff]
    %v1810 = vld [vmem:[#allocation8 + $0x170] sm:$0xf]
    %v1811 = vld [vmem:[#allocation8 + $0x174] sm:$0xff]
    %v1812 = vld [vmem:[#allocation8 + $0x17c] sm:$0xf]
    %v1813 = vld [vmem:[#allocation8 + $0x180] sm:$0xff]
    %v1814 = vld [vmem:[#allocation8 + $0x188] sm:$0xf]
    %v1815 = vld [vmem:[#allocation8 + $0x18c] sm:$0xff]
    %v1816 = vld [vmem:[#allocation8 + $0x194] sm:$0xf]
    %v1817 = vld [vmem:[#allocation8 + $0x198] sm:$0xff]
    %v1818 = vld [vmem:[#allocation8 + $0x1a0] sm:$0xf]
    %v1819 = vld [vmem:[#allocation8 + $0x1a4] sm:$0xff]
    %v1820 = vld [vmem:[#allocation8 + $0x1ac] sm:$0xf]
    %v1821 = vld [vmem:[#allocation8 + $0x1b0] sm:$0xff]
    %v1822 = vld [vmem:[#allocation8 + $0x1b8] sm:$0xf]
    %v1823 = vld [vmem:[#allocation8 + $0x1bc] sm:$0xff]
    %v1824 = vld [vmem:[#allocation8 + $0x1c4] sm:$0xf]
    %v1825 = vld [vmem:[#allocation8 + $0x1c8] sm:$0xff]
    %v1826 = vld [vmem:[#allocation8 + $0x1d0] sm:$0xf]
    %v1827 = vld [vmem:[#allocation8 + $0x1d4] sm:$0xff]
    %v1828 = vld [vmem:[#allocation8 + $0x1dc] sm:$0xf]
    %v1829 = vld [vmem:[#allocation8 + $0x1e0] sm:$0xff]
    %v1830 = vld [vmem:[#allocation8 + $0x1e8] sm:$0xf]
    %v1831 = vld [vmem:[#allocation8 + $0x1ec] sm:$0xff]
    %v1832 = vld [vmem:[#allocation8 + $0x1f4] sm:$0xf]
    %v1833 = vld [vmem:[#allocation8 + $0x1f8] sm:$0xff]
    %v1834 = vld [vmem:[#allocation8 + $0x200] sm:$0xf]
    %v1835 = vld [vmem:[#allocation8 + $0x204] sm:$0xff]
    %v1836 = vld [vmem:[#allocation8 + $0x20c] sm:$0xf]
    %v1837 = vld [vmem:[#allocation8 + $0x210] sm:$0xff]
    %v1838 = vld [vmem:[#allocation8 + $0x218] sm:$0xf]
    %v1839 = vld [vmem:[#allocation8 + $0x21c] sm:$0xff]
    %v1840 = vld [vmem:[#allocation8 + $0x224] sm:$0xf]
    %v1841 = vld [vmem:[#allocation8 + $0x228] sm:$0xff]
    %v1842 = vld [vmem:[#allocation8 + $0x230] sm:$0xf]
    %v1843 = vld [vmem:[#allocation8 + $0x234] sm:$0xff]
    %v1844 = vld [vmem:[#allocation8 + $0x23c] sm:$0xf]
    %v1845 = vld [vmem:[%s8] sm:$0x7]
    %v1847 = vlaneseq
    %v1848 = vshrl.u32 %v1847, 7
    %v1849 = vsub.s32 0, %v1848
    %v1850 = vrot.slane %v1845, %v1849
    %v1851 = vlaneseq
    %v1852 = vshrl.u32 %v1851, 7
    %v1853 = vsub.s32 1, %v1852
    %v1854 = vrot.slane %v1845, %v1853
    %v1855 = vlaneseq
    %v1856 = vshrl.u32 %v1855, 7
    %v1857 = vsub.s32 2, %v1856
    %v1858 = vrot.slane %v1845, %v1857
    %v1958 = vunpack.c.l.b16 %v1749
    %v1959 = vunpack.c.h.b16 %v1749
    %v1960 = vunpack.c.l.b16 %v1750
    %v1961 = vunpack.c.l.b16 %v1751
    %v1962 = vunpack.c.h.b16 %v1751
    %v1963 = vunpack.c.l.b16 %v1752
    %v1964 = vunpack.c.l.b16 %v1753
    %v1965 = vunpack.c.h.b16 %v1753
    %v1966 = vunpack.c.l.b16 %v1754
    %v1967 = vunpack.c.l.b16 %v1755
    %v1968 = vunpack.c.h.b16 %v1755
    %v1969 = vunpack.c.l.b16 %v1756
    %v1970 = vunpack.c.l.b16 %v1757
    %v1971 = vunpack.c.h.b16 %v1757
    %v1972 = vunpack.c.l.b16 %v1758
    %v1973 = vunpack.c.l.b16 %v1759
    %v1974 = vunpack.c.h.b16 %v1759
    %v1975 = vunpack.c.l.b16 %v1760
    %v1976 = vunpack.c.l.b16 %v1761
    %v1977 = vunpack.c.h.b16 %v1761
    %v1978 = vunpack.c.l.b16 %v1762
    %v1979 = vunpack.c.l.b16 %v1763
    %v1980 = vunpack.c.h.b16 %v1763
    %v1981 = vunpack.c.l.b16 %v1764
    %v1982 = vunpack.c.l.b16 %v1765
    %v1983 = vunpack.c.h.b16 %v1765
    %v1984 = vunpack.c.l.b16 %v1766
    %v1985 = vunpack.c.l.b16 %v1767
    %v1986 = vunpack.c.h.b16 %v1767
    %v1987 = vunpack.c.l.b16 %v1768
    %v1988 = vunpack.c.l.b16 %v1769
    %v1989 = vunpack.c.h.b16 %v1769
    %v1990 = vunpack.c.l.b16 %v1770
    %v1991 = vunpack.c.l.b16 %v1771
    %v1992 = vunpack.c.h.b16 %v1771
    %v1993 = vunpack.c.l.b16 %v1772
    %v1994 = vunpack.c.l.b16 %v1773
    %v1995 = vunpack.c.h.b16 %v1773
    %v1996 = vunpack.c.l.b16 %v1774
    %v1997 = vunpack.c.l.b16 %v1775
    %v1998 = vunpack.c.h.b16 %v1775
    %v1999 = vunpack.c.l.b16 %v1776
    %v2000 = vunpack.c.l.b16 %v1777
    %v2001 = vunpack.c.h.b16 %v1777
    %v2002 = vunpack.c.l.b16 %v1778
    %v2003 = vunpack.c.l.b16 %v1779
    %v2004 = vunpack.c.h.b16 %v1779
    %v2005 = vunpack.c.l.b16 %v1780
    %v2006 = vunpack.c.l.b16 %v1781
    %v2007 = vunpack.c.h.b16 %v1781
    %v2008 = vunpack.c.l.b16 %v1782
    %v2009 = vunpack.c.l.b16 %v1783
    %v2010 = vunpack.c.h.b16 %v1783
    %v2011 = vunpack.c.l.b16 %v1784
    %v2012 = vunpack.c.l.b16 %v1785
    %v2013 = vunpack.c.h.b16 %v1785
    %v2014 = vunpack.c.l.b16 %v1786
    %v2015 = vunpack.c.l.b16 %v1787
    %v2016 = vunpack.c.h.b16 %v1787
    %v2017 = vunpack.c.l.b16 %v1788
    %v2018 = vunpack.c.l.b16 %v1789
    %v2019 = vunpack.c.h.b16 %v1789
    %v2020 = vunpack.c.l.b16 %v1790
    %v2021 = vunpack.c.l.b16 %v1791
    %v2022 = vunpack.c.h.b16 %v1791
    %v2023 = vunpack.c.l.b16 %v1792
    %v2024 = vunpack.c.l.b16 %v1793
    %v2025 = vunpack.c.h.b16 %v1793
    %v2026 = vunpack.c.l.b16 %v1794
    %v2027 = vunpack.c.l.b16 %v1795
    %v2028 = vunpack.c.h.b16 %v1795
    %v2029 = vunpack.c.l.b16 %v1796
    %v2030 = vunpack.c.l.b16 %v1797
    %v2031 = vunpack.c.h.b16 %v1797
    %v2032 = vunpack.c.l.b16 %v1798
    %v2033 = vunpack.c.l.b16 %v1799
    %v2034 = vunpack.c.h.b16 %v1799
    %v2035 = vunpack.c.l.b16 %v1800
    %v2036 = vunpack.c.l.b16 %v1801
    %v2037 = vunpack.c.h.b16 %v1801
    %v2038 = vunpack.c.l.b16 %v1802
    %v2039 = vunpack.c.l.b16 %v1803
    %v2040 = vunpack.c.h.b16 %v1803
    %v2041 = vunpack.c.l.b16 %v1804
    %v2042 = vunpack.c.l.b16 %v1805
    %v2043 = vunpack.c.h.b16 %v1805
    %v2044 = vunpack.c.l.b16 %v1806
    %v2045 = vunpack.c.l.b16 %v1807
    %v2046 = vunpack.c.h.b16 %v1807
    %v2047 = vunpack.c.l.b16 %v1808
    %v2048 = vunpack.c.l.b16 %v1809
    %v2049 = vunpack.c.h.b16 %v1809
    %v2050 = vunpack.c.l.b16 %v1810
    %v2051 = vunpack.c.l.b16 %v1811
    %v2052 = vunpack.c.h.b16 %v1811
    %v2053 = vunpack.c.l.b16 %v1812
    %v2054 = vunpack.c.l.b16 %v1813
    %v2055 = vunpack.c.h.b16 %v1813
    %v2056 = vunpack.c.l.b16 %v1814
    %v2057 = vunpack.c.l.b16 %v1815
    %v2058 = vunpack.c.h.b16 %v1815
    %v2059 = vunpack.c.l.b16 %v1816
    %v2060 = vunpack.c.l.b16 %v1817
    %v2061 = vunpack.c.h.b16 %v1817
    %v2062 = vunpack.c.l.b16 %v1818
    %v2063 = vunpack.c.l.b16 %v1819
    %v2064 = vunpack.c.h.b16 %v1819
    %v2065 = vunpack.c.l.b16 %v1820
    %v2066 = vunpack.c.l.b16 %v1821
    %v2067 = vunpack.c.h.b16 %v1821
    %v2068 = vunpack.c.l.b16 %v1822
    %v2069 = vunpack.c.l.b16 %v1823
    %v2070 = vunpack.c.h.b16 %v1823
    %v2071 = vunpack.c.l.b16 %v1824
    %v2072 = vunpack.c.l.b16 %v1825
    %v2073 = vunpack.c.h.b16 %v1825
    %v2074 = vunpack.c.l.b16 %v1826
    %v2075 = vunpack.c.l.b16 %v1827
    %v2076 = vunpack.c.h.b16 %v1827
    %v2077 = vunpack.c.l.b16 %v1828
    %v2078 = vunpack.c.l.b16 %v1829
    %v2079 = vunpack.c.h.b16 %v1829
    %v2080 = vunpack.c.l.b16 %v1830
    %v2081 = vunpack.c.l.b16 %v1831
    %v2082 = vunpack.c.h.b16 %v1831
    %v2083 = vunpack.c.l.b16 %v1832
    %v2084 = vunpack.c.l.b16 %v1833
    %v2085 = vunpack.c.h.b16 %v1833
    %v2086 = vunpack.c.l.b16 %v1834
    %v2087 = vunpack.c.l.b16 %v1835
    %v2088 = vunpack.c.h.b16 %v1835
    %v2089 = vunpack.c.l.b16 %v1836
    %v2090 = vunpack.c.l.b16 %v1837
    %v2091 = vunpack.c.h.b16 %v1837
    %v2092 = vunpack.c.l.b16 %v1838
    %v2093 = vunpack.c.l.b16 %v1839
    %v2094 = vunpack.c.h.b16 %v1839
    %v2095 = vunpack.c.l.b16 %v1840
    %v2096 = vunpack.c.l.b16 %v1841
    %v2097 = vunpack.c.h.b16 %v1841
    %v2098 = vunpack.c.l.b16 %v1842
    %v2099 = vunpack.c.l.b16 %v1843
    %v2100 = vunpack.c.h.b16 %v1843
    %v2101 = vunpack.c.l.b16 %v1844
    %v2102 = vpack.c.b16 %v1961, %v1958
    %v2103 = vpack.c.b16 %v1962, %v1959
    %v2104 = vpack.c.b16 %v1963, %v1960
    %v2105 = vpack.c.b16 %v1967, %v1964
    %v2106 = vpack.c.b16 %v1968, %v1965
    %v2107 = vpack.c.b16 %v1969, %v1966
    %v2108 = vpack.c.b16 %v1973, %v1970
    %v2109 = vpack.c.b16 %v1974, %v1971
    %v2110 = vpack.c.b16 %v1975, %v1972
    %v2111 = vpack.c.b16 %v1979, %v1976
    %v2112 = vpack.c.b16 %v1980, %v1977
    %v2113 = vpack.c.b16 %v1981, %v1978
    %v2114 = vpack.c.b16 %v1985, %v1982
    %v2115 = vpack.c.b16 %v1986, %v1983
    %v2116 = vpack.c.b16 %v1987, %v1984
    %v2117 = vpack.c.b16 %v1991, %v1988
    %v2118 = vpack.c.b16 %v1992, %v1989
    %v2119 = vpack.c.b16 %v1993, %v1990
    %v2120 = vpack.c.b16 %v1997, %v1994
    %v2121 = vpack.c.b16 %v1998, %v1995
    %v2122 = vpack.c.b16 %v1999, %v1996
    %v2123 = vpack.c.b16 %v2003, %v2000
    %v2124 = vpack.c.b16 %v2004, %v2001
    %v2125 = vpack.c.b16 %v2005, %v2002
    %v2126 = vpack.c.b16 %v2009, %v2006
    %v2127 = vpack.c.b16 %v2010, %v2007
    %v2128 = vpack.c.b16 %v2011, %v2008
    %v2129 = vpack.c.b16 %v2015, %v2012
    %v2130 = vpack.c.b16 %v2016, %v2013
    %v2131 = vpack.c.b16 %v2017, %v2014
    %v2132 = vpack.c.b16 %v2021, %v2018
    %v2133 = vpack.c.b16 %v2022, %v2019
    %v2134 = vpack.c.b16 %v2023, %v2020
    %v2135 = vpack.c.b16 %v2027, %v2024
    %v2136 = vpack.c.b16 %v2028, %v2025
    %v2137 = vpack.c.b16 %v2029, %v2026
    %v2138 = vpack.c.b16 %v2033, %v2030
    %v2139 = vpack.c.b16 %v2034, %v2031
    %v2140 = vpack.c.b16 %v2035, %v2032
    %v2141 = vpack.c.b16 %v2039, %v2036
    %v2142 = vpack.c.b16 %v2040, %v2037
    %v2143 = vpack.c.b16 %v2041, %v2038
    %v2144 = vpack.c.b16 %v2045, %v2042
    %v2145 = vpack.c.b16 %v2046, %v2043
    %v2146 = vpack.c.b16 %v2047, %v2044
    %v2147 = vpack.c.b16 %v2051, %v2048
    %v2148 = vpack.c.b16 %v2052, %v2049
    %v2149 = vpack.c.b16 %v2053, %v2050
    %v2150 = vpack.c.b16 %v2057, %v2054
    %v2151 = vpack.c.b16 %v2058, %v2055
    %v2152 = vpack.c.b16 %v2059, %v2056
    %v2153 = vpack.c.b16 %v2063, %v2060
    %v2154 = vpack.c.b16 %v2064, %v2061
    %v2155 = vpack.c.b16 %v2065, %v2062
    %v2156 = vpack.c.b16 %v2069, %v2066
    %v2157 = vpack.c.b16 %v2070, %v2067
    %v2158 = vpack.c.b16 %v2071, %v2068
    %v2159 = vpack.c.b16 %v2075, %v2072
    %v2160 = vpack.c.b16 %v2076, %v2073
    %v2161 = vpack.c.b16 %v2077, %v2074
    %v2162 = vpack.c.b16 %v2081, %v2078
    %v2163 = vpack.c.b16 %v2082, %v2079
    %v2164 = vpack.c.b16 %v2083, %v2080
    %v2165 = vpack.c.b16 %v2087, %v2084
    %v2166 = vpack.c.b16 %v2088, %v2085
    %v2167 = vpack.c.b16 %v2089, %v2086
    %v2168 = vpack.c.b16 %v2093, %v2090
    %v2169 = vpack.c.b16 %v2094, %v2091
    %v2170 = vpack.c.b16 %v2095, %v2092
    %v2171 = vpack.c.b16 %v2099, %v2096
    %v2172 = vpack.c.b16 %v2100, %v2097
    %v2173 = vpack.c.b16 %v2101, %v2098
    %2246 = vmatprep.subr.bf16.mxu0 %v2103
    %2247 = vmatpush1.bf16.msra.mxu0 %v2102
    %2248 = vmatprep.subr.bf16.mxu0 %v2106
    %2249 = vmatpush1.bf16.msra.mxu0 %v2105
    %2250 = vmatprep.subr.bf16.mxu0 %v2109
    %2251 = vmatpush1.bf16.msra.mxu0 %v2108
    %2252 = vmatprep.subr.bf16.mxu0 %v2112
    %2253 = vmatpush1.bf16.msra.mxu0 %v2111
    %2254 = vmatprep.subr.bf16.mxu0 %v2115
    %2255 = vmatpush1.bf16.msra.mxu0 %v2114
    %2256 = vmatprep.subr.bf16.mxu0 %v2118
    %2257 = vmatpush1.bf16.msra.mxu0 %v2117
    %2258 = vmatprep.subr.bf16.mxu0 %v2121
    %2259 = vmatpush1.bf16.msra.mxu0 %v2120
    %2260 = vmatprep.subr.bf16.mxu0 %v2124
    %2261 = vmatpush1.bf16.msra.mxu0 %v2123
    %2262 = vmatprep.subr.bf16.mxu0 %v2127
    %2263 = vmatpush1.bf16.msra.mxu0 %v2126
    %2264 = vmatprep.subr.bf16.mxu0 %v2130
    %2265 = vmatpush1.bf16.msra.mxu0 %v2129
    %2266 = vmatprep.subr.bf16.mxu0 %v2133
    %2267 = vmatpush1.bf16.msra.mxu0 %v2132
    %2268 = vmatprep.subr.bf16.mxu0 %v2136
    %2269 = vmatpush1.bf16.msra.mxu0 %v2135
    %2270 = vmatprep.subr.bf16.mxu0 %v2139
    %2271 = vmatpush1.bf16.msra.mxu0 %v2138
    %2272 = vmatprep.subr.bf16.mxu0 %v2142
    %2273 = vmatpush1.bf16.msra.mxu0 %v2141
    %2274 = vmatprep.subr.bf16.mxu0 %v2145
    %2275 = vmatpush1.bf16.msra.mxu0 %v2144
    %2276 = vmatprep.subr.bf16.mxu0 %v2148
    %2277 = vmatpush1.bf16.msra.mxu0 %v2147
    %2278 = vmatprep.mubr.bf16.mxu0 %v1747
    %2279 = vmatmul.mubr.bf16.gmra.mrb[0].mxu0 %v1746
    %v2280 = vpop.f32.mrb[0].mxu0
    %v2281 = vadd.f32 %v1850, %v2280
    %v2282 = vpop.f32.mrb[0].mxu0
    %v2283 = vadd.f32 %v1854, %v2282
    %v2284 = vpop.f32.mrb[0].mxu0
    %v2285 = vadd.f32 %v1850, %v2284
    %v2286 = vpop.f32.mrb[0].mxu0
    %v2287 = vadd.f32 %v1854, %v2286
    %2288 = vdwg.mxu0
    %2289 = vmatprep.subr.bf16.mxu0 %v2151
    %2290 = vmatpush1.bf16.msra.mxu0 %v2150
    %2291 = vmatprep.subr.bf16.mxu0 %v2154
    %2292 = vmatpush1.bf16.msra.mxu0 %v2153
    %2293 = vmatprep.subr.bf16.mxu0 %v2157
    %2294 = vmatpush1.bf16.msra.mxu0 %v2156
    %2295 = vmatprep.subr.bf16.mxu0 %v2160
    %2296 = vmatpush1.bf16.msra.mxu0 %v2159
    %2297 = vmatprep.subr.bf16.mxu0 %v2163
    %2298 = vmatpush1.bf16.msra.mxu0 %v2162
    %2299 = vmatprep.subr.bf16.mxu0 %v2166
    %2300 = vmatpush1.bf16.msra.mxu0 %v2165
    %2301 = vmatprep.subr.bf16.mxu0 %v2169
    %2302 = vmatpush1.bf16.msra.mxu0 %v2168
    %2303 = vmatprep.subr.bf16.mxu0 %v2172
    %2304 = vmatpush1.bf16.msra.mxu0 %v2171
    %2305 = vmatprep.subr.bf16.mxu0 0
    %2306 = vmatpush1.bf16.msra.mxu0 0
    %2307 = vmatprep.subr.bf16.mxu0 0
    %2308 = vmatpush1.bf16.msra.mxu0 0
    %2309 = vmatprep.subr.bf16.mxu0 0
    %2310 = vmatpush1.bf16.msra.mxu0 0
    %2311 = vmatprep.subr.bf16.mxu0 0
    %2312 = vmatpush1.bf16.msra.mxu0 0
    %2313 = vmatprep.subr.bf16.mxu0 0
    %2314 = vmatpush1.bf16.msra.mxu0 0
    %2315 = vmatprep.subr.bf16.mxu0 0
    %2316 = vmatpush1.bf16.msra.mxu0 0
    %2317 = vmatprep.subr.bf16.mxu0 0
    %2318 = vmatpush1.bf16.msra.mxu0 0
    %2319 = vmatprep.subr.bf16.mxu0 0
    %2320 = vmatpush1.bf16.msra.mxu0 0
    %2321 = vmatprep.mubr.bf16.mxu0 0
    %2322 = vmatmul.mubr.bf16.gmra.mrb[0].mxu0 %v1748
    %v2323 = vpop.f32.mrb[0].mxu0
    %v2324 = vadd.f32 %v2281, %v2323
    %v2325 = vpop.f32.mrb[0].mxu0
    %v2326 = vadd.f32 %v2283, %v2325
    %v2327 = vpop.f32.mrb[0].mxu0
    %v2328 = vadd.f32 %v2285, %v2327
    %v2329 = vpop.f32.mrb[0].mxu0
    %v2330 = vadd.f32 %v2287, %v2329
    %2331 = vdwg.mxu0
    %2332 = vmatprep.subr.bf16.mxu0 0
    %2333 = vmatpush1.bf16.msra.mxu0 %v2104
    %2334 = vmatprep.subr.bf16.mxu0 0
    %2335 = vmatpush1.bf16.msra.mxu0 %v2107
    %2336 = vmatprep.subr.bf16.mxu0 0
    %2337 = vmatpush1.bf16.msra.mxu0 %v2110
    %2338 = vmatprep.subr.bf16.mxu0 0
    %2339 = vmatpush1.bf16.msra.mxu0 %v2113
    %2340 = vmatprep.subr.bf16.mxu0 0
    %2341 = vmatpush1.bf16.msra.mxu0 %v2116
    %2342 = vmatprep.subr.bf16.mxu0 0
    %2343 = vmatpush1.bf16.msra.mxu0 %v2119
    %2344 = vmatprep.subr.bf16.mxu0 0
    %2345 = vmatpush1.bf16.msra.mxu0 %v2122
    %2346 = vmatprep.subr.bf16.mxu0 0
    %2347 = vmatpush1.bf16.msra.mxu0 %v2125
    %2348 = vmatprep.subr.bf16.mxu0 0
    %2349 = vmatpush1.bf16.msra.mxu0 %v2128
    %2350 = vmatprep.subr.bf16.mxu0 0
    %2351 = vmatpush1.bf16.msra.mxu0 %v2131
    %2352 = vmatprep.subr.bf16.mxu0 0
    %2353 = vmatpush1.bf16.msra.mxu0 %v2134
    %2354 = vmatprep.subr.bf16.mxu0 0
    %2355 = vmatpush1.bf16.msra.mxu0 %v2137
    %2356 = vmatprep.subr.bf16.mxu0 0
    %2357 = vmatpush1.bf16.msra.mxu0 %v2140
    %2358 = vmatprep.subr.bf16.mxu0 0
    %2359 = vmatpush1.bf16.msra.mxu0 %v2143
    %2360 = vmatprep.subr.bf16.mxu0 0
    %2361 = vmatpush1.bf16.msra.mxu0 %v2146
    %2362 = vmatprep.subr.bf16.mxu0 0
    %2363 = vmatpush1.bf16.msra.mxu0 %v2149
    %2364 = vmatprep.mubr.bf16.mxu0 %v1747
    %2365 = vmatmul.mubr.bf16.gmra.mrb[0].mxu0 %v1746
    %v2366 = vpop.f32.mrb[0].mxu0
    %v2367 = vadd.f32 %v1858, %v2366
    %v2368 = vpop.f32.mrb[0].mxu0
    %v2369 = vpop.f32.mrb[0].mxu0
    %v2370 = vadd.f32 %v1858, %v2369
    %v2371 = vpop.f32.mrb[0].mxu0
    %2372 = vdwg.mxu0
    %2373 = vmatprep.subr.bf16.mxu0 0
    %2374 = vmatpush1.bf16.msra.mxu0 %v2152
    %2375 = vmatprep.subr.bf16.mxu0 0
    %2376 = vmatpush1.bf16.msra.mxu0 %v2155
    %2377 = vmatprep.subr.bf16.mxu0 0
    %2378 = vmatpush1.bf16.msra.mxu0 %v2158
    %2379 = vmatprep.subr.bf16.mxu0 0
    %2380 = vmatpush1.bf16.msra.mxu0 %v2161
    %2381 = vmatprep.subr.bf16.mxu0 0
    %2382 = vmatpush1.bf16.msra.mxu0 %v2164
    %2383 = vmatprep.subr.bf16.mxu0 0
    %2384 = vmatpush1.bf16.msra.mxu0 %v2167
    %2385 = vmatprep.subr.bf16.mxu0 0
    %2386 = vmatpush1.bf16.msra.mxu0 %v2170
    %2387 = vmatprep.subr.bf16.mxu0 0
    %2388 = vmatpush1.bf16.msra.mxu0 %v2173
    %2389 = vmatprep.subr.bf16.mxu0 0
    %2390 = vmatpush1.bf16.msra.mxu0 0
    %2391 = vmatprep.subr.bf16.mxu0 0
    %2392 = vmatpush1.bf16.msra.mxu0 0
    %2393 = vmatprep.subr.bf16.mxu0 0
    %2394 = vmatpush1.bf16.msra.mxu0 0
    %2395 = vmatprep.subr.bf16.mxu0 0
    %2396 = vmatpush1.bf16.msra.mxu0 0
    %2397 = vmatprep.subr.bf16.mxu0 0
    %2398 = vmatpush1.bf16.msra.mxu0 0
    %2399 = vmatprep.subr.bf16.mxu0 0
    %2400 = vmatpush1.bf16.msra.mxu0 0
    %2401 = vmatprep.subr.bf16.mxu0 0
    %2402 = vmatpush1.bf16.msra.mxu0 0
    %2403 = vmatprep.subr.bf16.mxu0 0
    %2404 = vmatpush1.bf16.msra.mxu0 0
    %2405 = vmatprep.mubr.bf16.mxu0 0
    %2406 = vmatmul.mubr.bf16.gmra.mrb[0].mxu0 %v1748
    %v2407 = vpop.f32.mrb[0].mxu0
    %v2408 = vadd.f32 %v2367, %v2407
    %v2409 = vpop.f32.mrb[0].mxu0
    %v2410 = vpop.f32.mrb[0].mxu0
    %v2411 = vadd.f32 %v2370, %v2410
    %v2412 = vpop.f32.mrb[0].mxu0
    %2413 = vdwg.mxu0
    %v2414 = vmax.f32 %v2324, 0.0
    %v2415 = vmax.f32 %v2326, 0.0
    %v2416 = vmax.f32 %v2408, 0.0
    %v2417 = vmax.f32 %v2328, 0.0
    %v2418 = vmax.f32 %v2330, 0.0
    %v2419 = vmax.f32 %v2411, 0.0
    %v2420 = vpack.c.bf16 %v2417, %v2414
    %v2421 = vpack.c.bf16 %v2418, %v2415
    %v2422 = vpack.c.bf16 %v2419, %v2416
    %v2423 = vld [vmem:[#allocation10] sm:$0xff]
    %v2424 = vld [vmem:[#allocation10 + $0x8] sm:$0xf]
    %v2425 = vld [vmem:[#allocation10 + $0xc] sm:$0xff]
    %v2426 = vld [vmem:[#allocation10 + $0x14] sm:$0xf]
    %v2427 = vld [vmem:[#allocation10 + $0x18] sm:$0xff]
    %v2428 = vld [vmem:[#allocation10 + $0x20] sm:$0xf]
    %v2429 = vld [vmem:[#allocation10 + $0x24] sm:$0xff]
    %v2430 = vld [vmem:[#allocation10 + $0x2c] sm:$0xf]
    %v2431 = vld [vmem:[#allocation10 + $0x30] sm:$0xff]
    %v2432 = vld [vmem:[#allocation10 + $0x38] sm:$0xf]
    %v2433 = vld [vmem:[#allocation10 + $0x3c] sm:$0xff]
    %v2434 = vld [vmem:[#allocation10 + $0x44] sm:$0xf]
    %v2435 = vld [vmem:[#allocation10 + $0x48] sm:$0xff]
    %v2436 = vld [vmem:[#allocation10 + $0x50] sm:$0xf]
    %v2437 = vld [vmem:[#allocation10 + $0x54] sm:$0xff]
    %v2438 = vld [vmem:[#allocation10 + $0x5c] sm:$0xf]
    %v2439 = vld [vmem:[#allocation10 + $0x60] sm:$0xff]
    %v2440 = vld [vmem:[#allocation10 + $0x68] sm:$0xf]
    %v2441 = vld [vmem:[#allocation10 + $0x6c] sm:$0xff]
    %v2442 = vld [vmem:[#allocation10 + $0x74] sm:$0xf]
    %v2443 = vld [vmem:[#allocation10 + $0x78] sm:$0xff]
    %v2444 = vld [vmem:[#allocation10 + $0x80] sm:$0xf]
    %v2445 = vld [vmem:[#allocation10 + $0x84] sm:$0xff]
    %v2446 = vld [vmem:[#allocation10 + $0x8c] sm:$0xf]
    %v2447 = vld [vmem:[#allocation10 + $0x90] sm:$0xff]
    %v2448 = vld [vmem:[#allocation10 + $0x98] sm:$0xf]
    %v2449 = vld [vmem:[#allocation10 + $0x9c] sm:$0xff]
    %v2450 = vld [vmem:[#allocation10 + $0xa4] sm:$0xf]
    %v2451 = vld [vmem:[#allocation10 + $0xa8] sm:$0xff]
    %v2452 = vld [vmem:[#allocation10 + $0xb0] sm:$0xf]
    %v2453 = vld [vmem:[#allocation10 + $0xb4] sm:$0xff]
    %v2454 = vld [vmem:[#allocation10 + $0xbc] sm:$0xf]
    %v2455 = vld [vmem:[#allocation10 + $0xc0] sm:$0xff]
    %v2456 = vld [vmem:[#allocation10 + $0xc8] sm:$0xf]
    %v2457 = vld [vmem:[#allocation10 + $0xcc] sm:$0xff]
    %v2458 = vld [vmem:[#allocation10 + $0xd4] sm:$0xf]
    %v2459 = vld [vmem:[#allocation10 + $0xd8] sm:$0xff]
    %v2460 = vld [vmem:[#allocation10 + $0xe0] sm:$0xf]
    %v2461 = vld [vmem:[#allocation10 + $0xe4] sm:$0xff]
    %v2462 = vld [vmem:[#allocation10 + $0xec] sm:$0xf]
    %v2463 = vld [vmem:[#allocation10 + $0xf0] sm:$0xff]
    %v2464 = vld [vmem:[#allocation10 + $0xf8] sm:$0xf]
    %v2465 = vld [vmem:[#allocation10 + $0xfc] sm:$0xff]
    %v2466 = vld [vmem:[#allocation10 + $0x104] sm:$0xf]
    %v2467 = vld [vmem:[#allocation10 + $0x108] sm:$0xff]
    %v2468 = vld [vmem:[#allocation10 + $0x110] sm:$0xf]
    %v2469 = vld [vmem:[#allocation10 + $0x114] sm:$0xff]
    %v2470 = vld [vmem:[#allocation10 + $0x11c] sm:$0xf]
    %v2471 = vld [vmem:[#allocation10 + $0x120] sm:$0xff]
    %v2472 = vld [vmem:[#allocation10 + $0x128] sm:$0xf]
    %v2473 = vld [vmem:[#allocation10 + $0x12c] sm:$0xff]
    %v2474 = vld [vmem:[#allocation10 + $0x134] sm:$0xf]
    %v2475 = vld [vmem:[#allocation10 + $0x138] sm:$0xff]
    %v2476 = vld [vmem:[#allocation10 + $0x140] sm:$0xf]
    %v2477 = vld [vmem:[#allocation10 + $0x144] sm:$0xff]
    %v2478 = vld [vmem:[#allocation10 + $0x14c] sm:$0xf]
    %v2479 = vld [vmem:[#allocation10 + $0x150] sm:$0xff]
    %v2480 = vld [vmem:[#allocation10 + $0x158] sm:$0xf]
    %v2481 = vld [vmem:[#allocation10 + $0x15c] sm:$0xff]
    %v2482 = vld [vmem:[#allocation10 + $0x164] sm:$0xf]
    %v2483 = vld [vmem:[#allocation10 + $0x168] sm:$0xff]
    %v2484 = vld [vmem:[#allocation10 + $0x170] sm:$0xf]
    %v2485 = vld [vmem:[#allocation10 + $0x174] sm:$0xff]
    %v2486 = vld [vmem:[#allocation10 + $0x17c] sm:$0xf]
    %v2487 = vld [vmem:[#allocation10 + $0x180] sm:$0xff]
    %v2488 = vld [vmem:[#allocation10 + $0x188] sm:$0xf]
    %v2489 = vld [vmem:[#allocation10 + $0x18c] sm:$0xff]
    %v2490 = vld [vmem:[#allocation10 + $0x194] sm:$0xf]
    %v2491 = vld [vmem:[#allocation10 + $0x198] sm:$0xff]
    %v2492 = vld [vmem:[#allocation10 + $0x1a0] sm:$0xf]
    %v2493 = vld [vmem:[#allocation10 + $0x1a4] sm:$0xff]
    %v2494 = vld [vmem:[#allocation10 + $0x1ac] sm:$0xf]
    %v2495 = vld [vmem:[#allocation10 + $0x1b0] sm:$0xff]
    %v2496 = vld [vmem:[#allocation10 + $0x1b8] sm:$0xf]
    %v2497 = vld [vmem:[#allocation10 + $0x1bc] sm:$0xff]
    %v2498 = vld [vmem:[#allocation10 + $0x1c4] sm:$0xf]
    %v2499 = vld [vmem:[#allocation10 + $0x1c8] sm:$0xff]
    %v2500 = vld [vmem:[#allocation10 + $0x1d0] sm:$0xf]
    %v2501 = vld [vmem:[#allocation10 + $0x1d4] sm:$0xff]
    %v2502 = vld [vmem:[#allocation10 + $0x1dc] sm:$0xf]
    %v2503 = vld [vmem:[#allocation10 + $0x1e0] sm:$0xff]
    %v2504 = vld [vmem:[#allocation10 + $0x1e8] sm:$0xf]
    %v2505 = vld [vmem:[#allocation10 + $0x1ec] sm:$0xff]
    %v2506 = vld [vmem:[#allocation10 + $0x1f4] sm:$0xf]
    %v2507 = vld [vmem:[#allocation10 + $0x1f8] sm:$0xff]
    %v2508 = vld [vmem:[#allocation10 + $0x200] sm:$0xf]
    %v2509 = vld [vmem:[#allocation10 + $0x204] sm:$0xff]
    %v2510 = vld [vmem:[#allocation10 + $0x20c] sm:$0xf]
    %v2511 = vld [vmem:[#allocation10 + $0x210] sm:$0xff]
    %v2512 = vld [vmem:[#allocation10 + $0x218] sm:$0xf]
    %v2513 = vld [vmem:[#allocation10 + $0x21c] sm:$0xff]
    %v2514 = vld [vmem:[#allocation10 + $0x224] sm:$0xf]
    %v2515 = vld [vmem:[#allocation10 + $0x228] sm:$0xff]
    %v2516 = vld [vmem:[#allocation10 + $0x230] sm:$0xf]
    %v2517 = vld [vmem:[#allocation10 + $0x234] sm:$0xff]
    %v2518 = vld [vmem:[#allocation10 + $0x23c] sm:$0xf]
    %v2519 = vld [vmem:[%s10] sm:$0x7]
    %v2521 = vlaneseq
    %v2522 = vshrl.u32 %v2521, 7
    %v2523 = vsub.s32 0, %v2522
    %v2524 = vrot.slane %v2519, %v2523
    %v2525 = vlaneseq
    %v2526 = vshrl.u32 %v2525, 7
    %v2527 = vsub.s32 1, %v2526
    %v2528 = vrot.slane %v2519, %v2527
    %v2529 = vlaneseq
    %v2530 = vshrl.u32 %v2529, 7
    %v2531 = vsub.s32 2, %v2530
    %v2532 = vrot.slane %v2519, %v2531
    %v2632 = vunpack.c.l.b16 %v2423
    %v2633 = vunpack.c.h.b16 %v2423
    %v2634 = vunpack.c.l.b16 %v2424
    %v2635 = vunpack.c.l.b16 %v2425
    %v2636 = vunpack.c.h.b16 %v2425
    %v2637 = vunpack.c.l.b16 %v2426
    %v2638 = vunpack.c.l.b16 %v2427
    %v2639 = vunpack.c.h.b16 %v2427
    %v2640 = vunpack.c.l.b16 %v2428
    %v2641 = vunpack.c.l.b16 %v2429
    %v2642 = vunpack.c.h.b16 %v2429
    %v2643 = vunpack.c.l.b16 %v2430
    %v2644 = vunpack.c.l.b16 %v2431
    %v2645 = vunpack.c.h.b16 %v2431
    %v2646 = vunpack.c.l.b16 %v2432
    %v2647 = vunpack.c.l.b16 %v2433
    %v2648 = vunpack.c.h.b16 %v2433
    %v2649 = vunpack.c.l.b16 %v2434
    %v2650 = vunpack.c.l.b16 %v2435
    %v2651 = vunpack.c.h.b16 %v2435
    %v2652 = vunpack.c.l.b16 %v2436
    %v2653 = vunpack.c.l.b16 %v2437
    %v2654 = vunpack.c.h.b16 %v2437
    %v2655 = vunpack.c.l.b16 %v2438
    %v2656 = vunpack.c.l.b16 %v2439
    %v2657 = vunpack.c.h.b16 %v2439
    %v2658 = vunpack.c.l.b16 %v2440
    %v2659 = vunpack.c.l.b16 %v2441
    %v2660 = vunpack.c.h.b16 %v2441
    %v2661 = vunpack.c.l.b16 %v2442
    %v2662 = vunpack.c.l.b16 %v2443
    %v2663 = vunpack.c.h.b16 %v2443
    %v2664 = vunpack.c.l.b16 %v2444
    %v2665 = vunpack.c.l.b16 %v2445
    %v2666 = vunpack.c.h.b16 %v2445
    %v2667 = vunpack.c.l.b16 %v2446
    %v2668 = vunpack.c.l.b16 %v2447
    %v2669 = vunpack.c.h.b16 %v2447
    %v2670 = vunpack.c.l.b16 %v2448
    %v2671 = vunpack.c.l.b16 %v2449
    %v2672 = vunpack.c.h.b16 %v2449
    %v2673 = vunpack.c.l.b16 %v2450
    %v2674 = vunpack.c.l.b16 %v2451
    %v2675 = vunpack.c.h.b16 %v2451
    %v2676 = vunpack.c.l.b16 %v2452
    %v2677 = vunpack.c.l.b16 %v2453
    %v2678 = vunpack.c.h.b16 %v2453
    %v2679 = vunpack.c.l.b16 %v2454
    %v2680 = vunpack.c.l.b16 %v2455
    %v2681 = vunpack.c.h.b16 %v2455
    %v2682 = vunpack.c.l.b16 %v2456
    %v2683 = vunpack.c.l.b16 %v2457
    %v2684 = vunpack.c.h.b16 %v2457
    %v2685 = vunpack.c.l.b16 %v2458
    %v2686 = vunpack.c.l.b16 %v2459
    %v2687 = vunpack.c.h.b16 %v2459
    %v2688 = vunpack.c.l.b16 %v2460
    %v2689 = vunpack.c.l.b16 %v2461
    %v2690 = vunpack.c.h.b16 %v2461
    %v2691 = vunpack.c.l.b16 %v2462
    %v2692 = vunpack.c.l.b16 %v2463
    %v2693 = vunpack.c.h.b16 %v2463
    %v2694 = vunpack.c.l.b16 %v2464
    %v2695 = vunpack.c.l.b16 %v2465
    %v2696 = vunpack.c.h.b16 %v2465
    %v2697 = vunpack.c.l.b16 %v2466
    %v2698 = vunpack.c.l.b16 %v2467
    %v2699 = vunpack.c.h.b16 %v2467
    %v2700 = vunpack.c.l.b16 %v2468
    %v2701 = vunpack.c.l.b16 %v2469
    %v2702 = vunpack.c.h.b16 %v2469
    %v2703 = vunpack.c.l.b16 %v2470
    %v2704 = vunpack.c.l.b16 %v2471
    %v2705 = vunpack.c.h.b16 %v2471
    %v2706 = vunpack.c.l.b16 %v2472
    %v2707 = vunpack.c.l.b16 %v2473
    %v2708 = vunpack.c.h.b16 %v2473
    %v2709 = vunpack.c.l.b16 %v2474
    %v2710 = vunpack.c.l.b16 %v2475
    %v2711 = vunpack.c.h.b16 %v2475
    %v2712 = vunpack.c.l.b16 %v2476
    %v2713 = vunpack.c.l.b16 %v2477
    %v2714 = vunpack.c.h.b16 %v2477
    %v2715 = vunpack.c.l.b16 %v2478
    %v2716 = vunpack.c.l.b16 %v2479
    %v2717 = vunpack.c.h.b16 %v2479
    %v2718 = vunpack.c.l.b16 %v2480
    %v2719 = vunpack.c.l.b16 %v2481
    %v2720 = vunpack.c.h.b16 %v2481
    %v2721 = vunpack.c.l.b16 %v2482
    %v2722 = vunpack.c.l.b16 %v2483
    %v2723 = vunpack.c.h.b16 %v2483
    %v2724 = vunpack.c.l.b16 %v2484
    %v2725 = vunpack.c.l.b16 %v2485
    %v2726 = vunpack.c.h.b16 %v2485
    %v2727 = vunpack.c.l.b16 %v2486
    %v2728 = vunpack.c.l.b16 %v2487
    %v2729 = vunpack.c.h.b16 %v2487
    %v2730 = vunpack.c.l.b16 %v2488
    %v2731 = vunpack.c.l.b16 %v2489
    %v2732 = vunpack.c.h.b16 %v2489
    %v2733 = vunpack.c.l.b16 %v2490
    %v2734 = vunpack.c.l.b16 %v2491
    %v2735 = vunpack.c.h.b16 %v2491
    %v2736 = vunpack.c.l.b16 %v2492
    %v2737 = vunpack.c.l.b16 %v2493
    %v2738 = vunpack.c.h.b16 %v2493
    %v2739 = vunpack.c.l.b16 %v2494
    %v2740 = vunpack.c.l.b16 %v2495
    %v2741 = vunpack.c.h.b16 %v2495
    %v2742 = vunpack.c.l.b16 %v2496
    %v2743 = vunpack.c.l.b16 %v2497
    %v2744 = vunpack.c.h.b16 %v2497
    %v2745 = vunpack.c.l.b16 %v2498
    %v2746 = vunpack.c.l.b16 %v2499
    %v2747 = vunpack.c.h.b16 %v2499
    %v2748 = vunpack.c.l.b16 %v2500
    %v2749 = vunpack.c.l.b16 %v2501
    %v2750 = vunpack.c.h.b16 %v2501
    %v2751 = vunpack.c.l.b16 %v2502
    %v2752 = vunpack.c.l.b16 %v2503
    %v2753 = vunpack.c.h.b16 %v2503
    %v2754 = vunpack.c.l.b16 %v2504
    %v2755 = vunpack.c.l.b16 %v2505
    %v2756 = vunpack.c.h.b16 %v2505
    %v2757 = vunpack.c.l.b16 %v2506
    %v2758 = vunpack.c.l.b16 %v2507
    %v2759 = vunpack.c.h.b16 %v2507
    %v2760 = vunpack.c.l.b16 %v2508
    %v2761 = vunpack.c.l.b16 %v2509
    %v2762 = vunpack.c.h.b16 %v2509
    %v2763 = vunpack.c.l.b16 %v2510
    %v2764 = vunpack.c.l.b16 %v2511
    %v2765 = vunpack.c.h.b16 %v2511
    %v2766 = vunpack.c.l.b16 %v2512
    %v2767 = vunpack.c.l.b16 %v2513
    %v2768 = vunpack.c.h.b16 %v2513
    %v2769 = vunpack.c.l.b16 %v2514
    %v2770 = vunpack.c.l.b16 %v2515
    %v2771 = vunpack.c.h.b16 %v2515
    %v2772 = vunpack.c.l.b16 %v2516
    %v2773 = vunpack.c.l.b16 %v2517
    %v2774 = vunpack.c.h.b16 %v2517
    %v2775 = vunpack.c.l.b16 %v2518
    %v2776 = vpack.c.b16 %v2635, %v2632
    %v2777 = vpack.c.b16 %v2636, %v2633
    %v2778 = vpack.c.b16 %v2637, %v2634
    %v2779 = vpack.c.b16 %v2641, %v2638
    %v2780 = vpack.c.b16 %v2642, %v2639
    %v2781 = vpack.c.b16 %v2643, %v2640
    %v2782 = vpack.c.b16 %v2647, %v2644
    %v2783 = vpack.c.b16 %v2648, %v2645
    %v2784 = vpack.c.b16 %v2649, %v2646
    %v2785 = vpack.c.b16 %v2653, %v2650
    %v2786 = vpack.c.b16 %v2654, %v2651
    %v2787 = vpack.c.b16 %v2655, %v2652
    %v2788 = vpack.c.b16 %v2659, %v2656
    %v2789 = vpack.c.b16 %v2660, %v2657
    %v2790 = vpack.c.b16 %v2661, %v2658
    %v2791 = vpack.c.b16 %v2665, %v2662
    %v2792 = vpack.c.b16 %v2666, %v2663
    %v2793 = vpack.c.b16 %v2667, %v2664
    %v2794 = vpack.c.b16 %v2671, %v2668
    %v2795 = vpack.c.b16 %v2672, %v2669
    %v2796 = vpack.c.b16 %v2673, %v2670
    %v2797 = vpack.c.b16 %v2677, %v2674
    %v2798 = vpack.c.b16 %v2678, %v2675
    %v2799 = vpack.c.b16 %v2679, %v2676
    %v2800 = vpack.c.b16 %v2683, %v2680
    %v2801 = vpack.c.b16 %v2684, %v2681
    %v2802 = vpack.c.b16 %v2685, %v2682
    %v2803 = vpack.c.b16 %v2689, %v2686
    %v2804 = vpack.c.b16 %v2690, %v2687
    %v2805 = vpack.c.b16 %v2691, %v2688
    %v2806 = vpack.c.b16 %v2695, %v2692
    %v2807 = vpack.c.b16 %v2696, %v2693
    %v2808 = vpack.c.b16 %v2697, %v2694
    %v2809 = vpack.c.b16 %v2701, %v2698
    %v2810 = vpack.c.b16 %v2702, %v2699
    %v2811 = vpack.c.b16 %v2703, %v2700
    %v2812 = vpack.c.b16 %v2707, %v2704
    %v2813 = vpack.c.b16 %v2708, %v2705
    %v2814 = vpack.c.b16 %v2709, %v2706
    %v2815 = vpack.c.b16 %v2713, %v2710
    %v2816 = vpack.c.b16 %v2714, %v2711
    %v2817 = vpack.c.b16 %v2715, %v2712
    %v2818 = vpack.c.b16 %v2719, %v2716
    %v2819 = vpack.c.b16 %v2720, %v2717
    %v2820 = vpack.c.b16 %v2721, %v2718
    %v2821 = vpack.c.b16 %v2725, %v2722
    %v2822 = vpack.c.b16 %v2726, %v2723
    %v2823 = vpack.c.b16 %v2727, %v2724
    %v2824 = vpack.c.b16 %v2731, %v2728
    %v2825 = vpack.c.b16 %v2732, %v2729
    %v2826 = vpack.c.b16 %v2733, %v2730
    %v2827 = vpack.c.b16 %v2737, %v2734
    %v2828 = vpack.c.b16 %v2738, %v2735
    %v2829 = vpack.c.b16 %v2739, %v2736
    %v2830 = vpack.c.b16 %v2743, %v2740
    %v2831 = vpack.c.b16 %v2744, %v2741
    %v2832 = vpack.c.b16 %v2745, %v2742
    %v2833 = vpack.c.b16 %v2749, %v2746
    %v2834 = vpack.c.b16 %v2750, %v2747
    %v2835 = vpack.c.b16 %v2751, %v2748
    %v2836 = vpack.c.b16 %v2755, %v2752
    %v2837 = vpack.c.b16 %v2756, %v2753
    %v2838 = vpack.c.b16 %v2757, %v2754
    %v2839 = vpack.c.b16 %v2761, %v2758
    %v2840 = vpack.c.b16 %v2762, %v2759
    %v2841 = vpack.c.b16 %v2763, %v2760
    %v2842 = vpack.c.b16 %v2767, %v2764
    %v2843 = vpack.c.b16 %v2768, %v2765
    %v2844 = vpack.c.b16 %v2769, %v2766
    %v2845 = vpack.c.b16 %v2773, %v2770
    %v2846 = vpack.c.b16 %v2774, %v2771
    %v2847 = vpack.c.b16 %v2775, %v2772
    %2920 = vmatprep.subr.bf16.mxu0 %v2777
    %2921 = vmatpush1.bf16.msra.mxu0 %v2776
    %2922 = vmatprep.subr.bf16.mxu0 %v2780
    %2923 = vmatpush1.bf16.msra.mxu0 %v2779
    %2924 = vmatprep.subr.bf16.mxu0 %v2783
    %2925 = vmatpush1.bf16.msra.mxu0 %v2782
    %2926 = vmatprep.subr.bf16.mxu0 %v2786
    %2927 = vmatpush1.bf16.msra.mxu0 %v2785
    %2928 = vmatprep.subr.bf16.mxu0 %v2789
    %2929 = vmatpush1.bf16.msra.mxu0 %v2788
    %2930 = vmatprep.subr.bf16.mxu0 %v2792
    %2931 = vmatpush1.bf16.msra.mxu0 %v2791
    %2932 = vmatprep.subr.bf16.mxu0 %v2795
    %2933 = vmatpush1.bf16.msra.mxu0 %v2794
    %2934 = vmatprep.subr.bf16.mxu0 %v2798
    %2935 = vmatpush1.bf16.msra.mxu0 %v2797
    %2936 = vmatprep.subr.bf16.mxu0 %v2801
    %2937 = vmatpush1.bf16.msra.mxu0 %v2800
    %2938 = vmatprep.subr.bf16.mxu0 %v2804
    %2939 = vmatpush1.bf16.msra.mxu0 %v2803
    %2940 = vmatprep.subr.bf16.mxu0 %v2807
    %2941 = vmatpush1.bf16.msra.mxu0 %v2806
    %2942 = vmatprep.subr.bf16.mxu0 %v2810
    %2943 = vmatpush1.bf16.msra.mxu0 %v2809
    %2944 = vmatprep.subr.bf16.mxu0 %v2813
    %2945 = vmatpush1.bf16.msra.mxu0 %v2812
    %2946 = vmatprep.subr.bf16.mxu0 %v2816
    %2947 = vmatpush1.bf16.msra.mxu0 %v2815
    %2948 = vmatprep.subr.bf16.mxu0 %v2819
    %2949 = vmatpush1.bf16.msra.mxu0 %v2818
    %2950 = vmatprep.subr.bf16.mxu0 %v2822
    %2951 = vmatpush1.bf16.msra.mxu0 %v2821
    %2952 = vmatprep.mubr.bf16.mxu0 %v2421
    %2953 = vmatmul.mubr.bf16.gmra.mrb[0].mxu0 %v2420
    %v2954 = vpop.f32.mrb[0].mxu0
    %v2955 = vadd.f32 %v2524, %v2954
    %v2956 = vpop.f32.mrb[0].mxu0
    %v2957 = vadd.f32 %v2528, %v2956
    %v2958 = vpop.f32.mrb[0].mxu0
    %v2959 = vadd.f32 %v2524, %v2958
    %v2960 = vpop.f32.mrb[0].mxu0
    %v2961 = vadd.f32 %v2528, %v2960
    %2962 = vdwg.mxu0
    %2963 = vmatprep.subr.bf16.mxu0 %v2825
    %2964 = vmatpush1.bf16.msra.mxu0 %v2824
    %2965 = vmatprep.subr.bf16.mxu0 %v2828
    %2966 = vmatpush1.bf16.msra.mxu0 %v2827
    %2967 = vmatprep.subr.bf16.mxu0 %v2831
    %2968 = vmatpush1.bf16.msra.mxu0 %v2830
    %2969 = vmatprep.subr.bf16.mxu0 %v2834
    %2970 = vmatpush1.bf16.msra.mxu0 %v2833
    %2971 = vmatprep.subr.bf16.mxu0 %v2837
    %2972 = vmatpush1.bf16.msra.mxu0 %v2836
    %2973 = vmatprep.subr.bf16.mxu0 %v2840
    %2974 = vmatpush1.bf16.msra.mxu0 %v2839
    %2975 = vmatprep.subr.bf16.mxu0 %v2843
    %2976 = vmatpush1.bf16.msra.mxu0 %v2842
    %2977 = vmatprep.subr.bf16.mxu0 %v2846
    %2978 = vmatpush1.bf16.msra.mxu0 %v2845
    %2979 = vmatprep.subr.bf16.mxu0 0
    %2980 = vmatpush1.bf16.msra.mxu0 0
    %2981 = vmatprep.subr.bf16.mxu0 0
    %2982 = vmatpush1.bf16.msra.mxu0 0
    %2983 = vmatprep.subr.bf16.mxu0 0
    %2984 = vmatpush1.bf16.msra.mxu0 0
    %2985 = vmatprep.subr.bf16.mxu0 0
    %2986 = vmatpush1.bf16.msra.mxu0 0
    %2987 = vmatprep.subr.bf16.mxu0 0
    %2988 = vmatpush1.bf16.msra.mxu0 0
    %2989 = vmatprep.subr.bf16.mxu0 0
    %2990 = vmatpush1.bf16.msra.mxu0 0
    %2991 = vmatprep.subr.bf16.mxu0 0
    %2992 = vmatpush1.bf16.msra.mxu0 0
    %2993 = vmatprep.subr.bf16.mxu0 0
    %2994 = vmatpush1.bf16.msra.mxu0 0
    %2995 = vmatprep.mubr.bf16.mxu0 0
    %2996 = vmatmul.mubr.bf16.gmra.mrb[0].mxu0 %v2422
    %v2997 = vpop.f32.mrb[0].mxu0
    %v2998 = vadd.f32 %v2955, %v2997
    %v2999 = vpop.f32.mrb[0].mxu0
    %v3000 = vadd.f32 %v2957, %v2999
    %v3001 = vpop.f32.mrb[0].mxu0
    %v3002 = vadd.f32 %v2959, %v3001
    %v3003 = vpop.f32.mrb[0].mxu0
    %v3004 = vadd.f32 %v2961, %v3003
    %3005 = vdwg.mxu0
    %3006 = vmatprep.subr.bf16.mxu0 0
    %3007 = vmatpush1.bf16.msra.mxu0 %v2778
    %3008 = vmatprep.subr.bf16.mxu0 0
    %3009 = vmatpush1.bf16.msra.mxu0 %v2781
    %3010 = vmatprep.subr.bf16.mxu0 0
    %3011 = vmatpush1.bf16.msra.mxu0 %v2784
    %3012 = vmatprep.subr.bf16.mxu0 0
    %3013 = vmatpush1.bf16.msra.mxu0 %v2787
    %3014 = vmatprep.subr.bf16.mxu0 0
    %3015 = vmatpush1.bf16.msra.mxu0 %v2790
    %3016 = vmatprep.subr.bf16.mxu0 0
    %3017 = vmatpush1.bf16.msra.mxu0 %v2793
    %3018 = vmatprep.subr.bf16.mxu0 0
    %3019 = vmatpush1.bf16.msra.mxu0 %v2796
    %3020 = vmatprep.subr.bf16.mxu0 0
    %3021 = vmatpush1.bf16.msra.mxu0 %v2799
    %3022 = vmatprep.subr.bf16.mxu0 0
    %3023 = vmatpush1.bf16.msra.mxu0 %v2802
    %3024 = vmatprep.subr.bf16.mxu0 0
    %3025 = vmatpush1.bf16.msra.mxu0 %v2805
    %3026 = vmatprep.subr.bf16.mxu0 0
    %3027 = vmatpush1.bf16.msra.mxu0 %v2808
    %3028 = vmatprep.subr.bf16.mxu0 0
    %3029 = vmatpush1.bf16.msra.mxu0 %v2811
    %3030 = vmatprep.subr.bf16.mxu0 0
    %3031 = vmatpush1.bf16.msra.mxu0 %v2814
    %3032 = vmatprep.subr.bf16.mxu0 0
    %3033 = vmatpush1.bf16.msra.mxu0 %v2817
    %3034 = vmatprep.subr.bf16.mxu0 0
    %3035 = vmatpush1.bf16.msra.mxu0 %v2820
    %3036 = vmatprep.subr.bf16.mxu0 0
    %3037 = vmatpush1.bf16.msra.mxu0 %v2823
    %3038 = vmatprep.mubr.bf16.mxu0 %v2421
    %3039 = vmatmul.mubr.bf16.gmra.mrb[0].mxu0 %v2420
    %v3040 = vpop.f32.mrb[0].mxu0
    %v3041 = vadd.f32 %v2532, %v3040
    %v3042 = vpop.f32.mrb[0].mxu0
    %v3043 = vpop.f32.mrb[0].mxu0
    %v3044 = vadd.f32 %v2532, %v3043
    %v3045 = vpop.f32.mrb[0].mxu0
    %3046 = vdwg.mxu0
    %3047 = vmatprep.subr.bf16.mxu0 0
    %3048 = vmatpush1.bf16.msra.mxu0 %v2826
    %3049 = vmatprep.subr.bf16.mxu0 0
    %3050 = vmatpush1.bf16.msra.mxu0 %v2829
    %3051 = vmatprep.subr.bf16.mxu0 0
    %3052 = vmatpush1.bf16.msra.mxu0 %v2832
    %3053 = vmatprep.subr.bf16.mxu0 0
    %3054 = vmatpush1.bf16.msra.mxu0 %v2835
    %3055 = vmatprep.subr.bf16.mxu0 0
    %3056 = vmatpush1.bf16.msra.mxu0 %v2838
    %3057 = vmatprep.subr.bf16.mxu0 0
    %3058 = vmatpush1.bf16.msra.mxu0 %v2841
    %3059 = vmatprep.subr.bf16.mxu0 0
    %3060 = vmatpush1.bf16.msra.mxu0 %v2844
    %3061 = vmatprep.subr.bf16.mxu0 0
    %3062 = vmatpush1.bf16.msra.mxu0 %v2847
    %3063 = vmatprep.subr.bf16.mxu0 0
    %3064 = vmatpush1.bf16.msra.mxu0 0
    %3065 = vmatprep.subr.bf16.mxu0 0
    %3066 = vmatpush1.bf16.msra.mxu0 0
    %3067 = vmatprep.subr.bf16.mxu0 0
    %3068 = vmatpush1.bf16.msra.mxu0 0
    %3069 = vmatprep.subr.bf16.mxu0 0
    %3070 = vmatpush1.bf16.msra.mxu0 0
    %3071 = vmatprep.subr.bf16.mxu0 0
    %3072 = vmatpush1.bf16.msra.mxu0 0
    %3073 = vmatprep.subr.bf16.mxu0 0
    %3074 = vmatpush1.bf16.msra.mxu0 0
    %3075 = vmatprep.subr.bf16.mxu0 0
    %3076 = vmatpush1.bf16.msra.mxu0 0
    %3077 = vmatprep.subr.bf16.mxu0 0
    %3078 = vmatpush1.bf16.msra.mxu0 0
    %3079 = vmatprep.mubr.bf16.mxu0 0
    %3080 = vmatmul.mubr.bf16.gmra.mrb[0].mxu0 %v2422
    %v3081 = vpop.f32.mrb[0].mxu0
    %v3082 = vadd.f32 %v3041, %v3081
    %v3083 = vpop.f32.mrb[0].mxu0
    %v3084 = vpop.f32.mrb[0].mxu0
    %v3085 = vadd.f32 %v3044, %v3084
    %v3086 = vpop.f32.mrb[0].mxu0
    %3087 = vdwg.mxu0
    %v3088 = vmax.f32 %v2998, 0.0
    %v3089 = vmax.f32 %v3000, 0.0
    %v3090 = vmax.f32 %v3082, 0.0
    %v3091 = vmax.f32 %v3002, 0.0
    %v3092 = vmax.f32 %v3004, 0.0
    %v3093 = vmax.f32 %v3085, 0.0
    %v3094 = vpack.c.bf16 %v3091, %v3088
    %v3095 = vpack.c.bf16 %v3092, %v3089
    %v3096 = vpack.c.bf16 %v3093, %v3090
    %v3097 = vld [vmem:[#allocation11] sm:$0xf]
    %v3098 = vld [vmem:[#allocation11 + $0x4] sm:$0xf]
    %v3099 = vld [vmem:[#allocation11 + $0x8] sm:$0xf]
    %v3100 = vld [vmem:[#allocation11 + $0xc] sm:$0xf]
    %v3101 = vld [vmem:[#allocation11 + $0x10] sm:$0xf]
    %v3102 = vld [vmem:[#allocation11 + $0x14] sm:$0xf]
    %v3103 = vld [vmem:[#allocation11 + $0x18] sm:$0xf]
    %v3104 = vld [vmem:[#allocation11 + $0x1c] sm:$0xf]
    %v3105 = vld [vmem:[#allocation11 + $0x20] sm:$0xf]
    %v3106 = vld [vmem:[#allocation11 + $0x24] sm:$0xf]
    %v3107 = vld [vmem:[#allocation11 + $0x28] sm:$0xf]
    %v3108 = vld [vmem:[#allocation11 + $0x2c] sm:$0xf]
    %v3109 = vld [vmem:[#allocation11 + $0x30] sm:$0xf]
    %v3110 = vld [vmem:[#allocation11 + $0x34] sm:$0xf]
    %v3111 = vld [vmem:[#allocation11 + $0x38] sm:$0xf]
    %v3112 = vld [vmem:[#allocation11 + $0x3c] sm:$0xf]
    %v3113 = vld [vmem:[#allocation11 + $0x40] sm:$0xf]
    %v3114 = vld [vmem:[#allocation11 + $0x44] sm:$0xf]
    %v3115 = vld [vmem:[#allocation11 + $0x48] sm:$0xf]
    %v3116 = vld [vmem:[#allocation11 + $0x4c] sm:$0xf]
    %v3117 = vld [vmem:[#allocation11 + $0x50] sm:$0xf]
    %v3118 = vld [vmem:[#allocation11 + $0x54] sm:$0xf]
    %v3119 = vld [vmem:[#allocation11 + $0x58] sm:$0xf]
    %v3120 = vld [vmem:[#allocation11 + $0x5c] sm:$0xf]
    %v3121 = vld [vmem:[#allocation11 + $0x60] sm:$0xf]
    %v3122 = vld [vmem:[#allocation11 + $0x64] sm:$0xf]
    %v3123 = vld [vmem:[#allocation11 + $0x68] sm:$0xf]
    %v3124 = vld [vmem:[#allocation11 + $0x6c] sm:$0xf]
    %v3125 = vld [vmem:[#allocation11 + $0x70] sm:$0xf]
    %v3126 = vld [vmem:[#allocation11 + $0x74] sm:$0xf]
    %v3127 = vld [vmem:[#allocation11 + $0x78] sm:$0xf]
    %v3128 = vld [vmem:[#allocation11 + $0x7c] sm:$0xf]
    %v3129 = vld [vmem:[#allocation11 + $0x80] sm:$0xf]
    %v3130 = vld [vmem:[#allocation11 + $0x84] sm:$0xf]
    %v3131 = vld [vmem:[#allocation11 + $0x88] sm:$0xf]
    %v3132 = vld [vmem:[#allocation11 + $0x8c] sm:$0xf]
    %v3133 = vld [vmem:[#allocation11 + $0x90] sm:$0xf]
    %v3134 = vld [vmem:[#allocation11 + $0x94] sm:$0xf]
    %v3135 = vld [vmem:[#allocation11 + $0x98] sm:$0xf]
    %v3136 = vld [vmem:[#allocation11 + $0x9c] sm:$0xf]
    %v3137 = vld [vmem:[#allocation11 + $0xa0] sm:$0xf]
    %v3138 = vld [vmem:[#allocation11 + $0xa4] sm:$0xf]
    %v3139 = vld [vmem:[#allocation11 + $0xa8] sm:$0xf]
    %v3140 = vld [vmem:[#allocation11 + $0xac] sm:$0xf]
    %v3141 = vld [vmem:[#allocation11 + $0xb0] sm:$0xf]
    %v3142 = vld [vmem:[#allocation11 + $0xb4] sm:$0xf]
    %v3143 = vld [vmem:[#allocation11 + $0xb8] sm:$0xf]
    %v3144 = vld [vmem:[#allocation11 + $0xbc] sm:$0xf]
    %v3145 = vld [vmem:[%s12] sm:$0x1]
    %v3147 = vlaneseq
    %v3148 = vshrl.u32 %v3147, 7
    %v3149 = vsub.s32 0, %v3148
    %v3150 = vrot.slane %v3145, %v3149
    %v3200 = vunpack.c.l.b16 %v3097
    %v3201 = vunpack.c.l.b16 %v3098
    %v3202 = vunpack.c.l.b16 %v3099
    %v3203 = vunpack.c.l.b16 %v3100
    %v3204 = vunpack.c.l.b16 %v3101
    %v3205 = vunpack.c.l.b16 %v3102
    %v3206 = vunpack.c.l.b16 %v3103
    %v3207 = vunpack.c.l.b16 %v3104
    %v3208 = vunpack.c.l.b16 %v3105
    %v3209 = vunpack.c.l.b16 %v3106
    %v3210 = vunpack.c.l.b16 %v3107
    %v3211 = vunpack.c.l.b16 %v3108
    %v3212 = vunpack.c.l.b16 %v3109
    %v3213 = vunpack.c.l.b16 %v3110
    %v3214 = vunpack.c.l.b16 %v3111
    %v3215 = vunpack.c.l.b16 %v3112
    %v3216 = vunpack.c.l.b16 %v3113
    %v3217 = vunpack.c.l.b16 %v3114
    %v3218 = vunpack.c.l.b16 %v3115
    %v3219 = vunpack.c.l.b16 %v3116
    %v3220 = vunpack.c.l.b16 %v3117
    %v3221 = vunpack.c.l.b16 %v3118
    %v3222 = vunpack.c.l.b16 %v3119
    %v3223 = vunpack.c.l.b16 %v3120
    %v3224 = vunpack.c.l.b16 %v3121
    %v3225 = vunpack.c.l.b16 %v3122
    %v3226 = vunpack.c.l.b16 %v3123
    %v3227 = vunpack.c.l.b16 %v3124
    %v3228 = vunpack.c.l.b16 %v3125
    %v3229 = vunpack.c.l.b16 %v3126
    %v3230 = vunpack.c.l.b16 %v3127
    %v3231 = vunpack.c.l.b16 %v3128
    %v3232 = vunpack.c.l.b16 %v3129
    %v3233 = vunpack.c.l.b16 %v3130
    %v3234 = vunpack.c.l.b16 %v3131
    %v3235 = vunpack.c.l.b16 %v3132
    %v3236 = vunpack.c.l.b16 %v3133
    %v3237 = vunpack.c.l.b16 %v3134
    %v3238 = vunpack.c.l.b16 %v3135
    %v3239 = vunpack.c.l.b16 %v3136
    %v3240 = vunpack.c.l.b16 %v3137
    %v3241 = vunpack.c.l.b16 %v3138
    %v3242 = vunpack.c.l.b16 %v3139
    %v3243 = vunpack.c.l.b16 %v3140
    %v3244 = vunpack.c.l.b16 %v3141
    %v3245 = vunpack.c.l.b16 %v3142
    %v3246 = vunpack.c.l.b16 %v3143
    %v3247 = vunpack.c.l.b16 %v3144
    %v3248 = vpack.c.b16 %v3201, %v3200
    %v3249 = vpack.c.b16 %v3203, %v3202
    %v3250 = vpack.c.b16 %v3205, %v3204
    %v3251 = vpack.c.b16 %v3207, %v3206
    %v3252 = vpack.c.b16 %v3209, %v3208
    %v3253 = vpack.c.b16 %v3211, %v3210
    %v3254 = vpack.c.b16 %v3213, %v3212
    %v3255 = vpack.c.b16 %v3215, %v3214
    %v3256 = vpack.c.b16 %v3217, %v3216
    %v3257 = vpack.c.b16 %v3219, %v3218
    %v3258 = vpack.c.b16 %v3221, %v3220
    %v3259 = vpack.c.b16 %v3223, %v3222
    %v3260 = vpack.c.b16 %v3225, %v3224
    %v3261 = vpack.c.b16 %v3227, %v3226
    %v3262 = vpack.c.b16 %v3229, %v3228
    %v3263 = vpack.c.b16 %v3231, %v3230
    %v3264 = vpack.c.b16 %v3233, %v3232
    %v3265 = vpack.c.b16 %v3235, %v3234
    %v3266 = vpack.c.b16 %v3237, %v3236
    %v3267 = vpack.c.b16 %v3239, %v3238
    %v3268 = vpack.c.b16 %v3241, %v3240
    %v3269 = vpack.c.b16 %v3243, %v3242
    %v3270 = vpack.c.b16 %v3245, %v3244
    %v3271 = vpack.c.b16 %v3247, %v3246
    %3296 = vmatprep.subr.bf16.mxu0 0
    %3297 = vmatpush1.bf16.msra.mxu0 %v3248
    %3298 = vmatprep.subr.bf16.mxu0 0
    %3299 = vmatpush1.bf16.msra.mxu0 %v3249
    %3300 = vmatprep.subr.bf16.mxu0 0
    %3301 = vmatpush1.bf16.msra.mxu0 %v3250
    %3302 = vmatprep.subr.bf16.mxu0 0
    %3303 = vmatpush1.bf16.msra.mxu0 %v3251
    %3304 = vmatprep.subr.bf16.mxu0 0
    %3305 = vmatpush1.bf16.msra.mxu0 %v3252
    %3306 = vmatprep.subr.bf16.mxu0 0
    %3307 = vmatpush1.bf16.msra.mxu0 %v3253
    %3308 = vmatprep.subr.bf16.mxu0 0
    %3309 = vmatpush1.bf16.msra.mxu0 %v3254
    %3310 = vmatprep.subr.bf16.mxu0 0
    %3311 = vmatpush1.bf16.msra.mxu0 %v3255
    %3312 = vmatprep.subr.bf16.mxu0 0
    %3313 = vmatpush1.bf16.msra.mxu0 %v3256
    %3314 = vmatprep.subr.bf16.mxu0 0
    %3315 = vmatpush1.bf16.msra.mxu0 %v3257
    %3316 = vmatprep.subr.bf16.mxu0 0
    %3317 = vmatpush1.bf16.msra.mxu0 %v3258
    %3318 = vmatprep.subr.bf16.mxu0 0
    %3319 = vmatpush1.bf16.msra.mxu0 %v3259
    %3320 = vmatprep.subr.bf16.mxu0 0
    %3321 = vmatpush1.bf16.msra.mxu0 %v3260
    %3322 = vmatprep.subr.bf16.mxu0 0
    %3323 = vmatpush1.bf16.msra.mxu0 %v3261
    %3324 = vmatprep.subr.bf16.mxu0 0
    %3325 = vmatpush1.bf16.msra.mxu0 %v3262
    %3326 = vmatprep.subr.bf16.mxu0 0
    %3327 = vmatpush1.bf16.msra.mxu0 %v3263
    %3328 = vmatprep.mubr.bf16.mxu0 %v3095
    %3329 = vmatmul.mubr.bf16.gmra.mrb[0].mxu0 %v3094
    %v3330 = vpop.f32.mrb[0].mxu0
    %v3331 = vadd.f32 %v3150, %v3330
    %v3332 = vpop.f32.mrb[0].mxu0
    %v3333 = vpop.f32.mrb[0].mxu0
    %v3334 = vadd.f32 %v3150, %v3333
    %v3335 = vpop.f32.mrb[0].mxu0
    %3336 = vdwg.mxu0
    %3337 = vmatprep.subr.bf16.mxu0 0
    %3338 = vmatpush1.bf16.msra.mxu0 %v3264
    %3339 = vmatprep.subr.bf16.mxu0 0
    %3340 = vmatpush1.bf16.msra.mxu0 %v3265
    %3341 = vmatprep.subr.bf16.mxu0 0
    %3342 = vmatpush1.bf16.msra.mxu0 %v3266
    %3343 = vmatprep.subr.bf16.mxu0 0
    %3344 = vmatpush1.bf16.msra.mxu0 %v3267
    %3345 = vmatprep.subr.bf16.mxu0 0
    %3346 = vmatpush1.bf16.msra.mxu0 %v3268
    %3347 = vmatprep.subr.bf16.mxu0 0
    %3348 = vmatpush1.bf16.msra.mxu0 %v3269
    %3349 = vmatprep.subr.bf16.mxu0 0
    %3350 = vmatpush1.bf16.msra.mxu0 %v3270
    %3351 = vmatprep.subr.bf16.mxu0 0
    %3352 = vmatpush1.bf16.msra.mxu0 %v3271
    %3353 = vmatprep.subr.bf16.mxu0 0
    %3354 = vmatpush1.bf16.msra.mxu0 0
    %3355 = vmatprep.subr.bf16.mxu0 0
    %3356 = vmatpush1.bf16.msra.mxu0 0
    %3357 = vmatprep.subr.bf16.mxu0 0
    %3358 = vmatpush1.bf16.msra.mxu0 0
    %3359 = vmatprep.subr.bf16.mxu0 0
    %3360 = vmatpush1.bf16.msra.mxu0 0
    %3361 = vmatprep.subr.bf16.mxu0 0
    %3362 = vmatpush1.bf16.msra.mxu0 0
    %3363 = vmatprep.subr.bf16.mxu0 0
    %3364 = vmatpush1.bf16.msra.mxu0 0
    %3365 = vmatprep.subr.bf16.mxu0 0
    %3366 = vmatpush1.bf16.msra.mxu0 0
    %3367 = vmatprep.subr.bf16.mxu0 0
    %3368 = vmatpush1.bf16.msra.mxu0 0
    %3369 = vmatprep.mubr.bf16.mxu0 0
    %3370 = vmatmul.mubr.bf16.gmra.mrb[0].mxu0 %v3096
    %v3371 = vpop.f32.mrb[0].mxu0
    %v3372 = vadd.f32 %v3331, %v3371
    %v3373 = vpop.f32.mrb[0].mxu0
    %v3374 = vpop.f32.mrb[0].mxu0
    %v3375 = vadd.f32 %v3334, %v3374
    %v3376 = vpop.f32.mrb[0].mxu0
    %3377 = vdwg.mxu0
    %v3378 = vadd.f32 %v3372, %v128
    %v3379 = vadd.f32 %v3375, %v129
    %3380 = vst [vmem:[#allocation13] sm:$0xff] %v3378
    %3381 = vst [vmem:[#allocation13 + $0x8] sm:$0xff] %v3379
    // Predicated region
    $region78: #{another_dn_forward.1} parent=1 // pred_check
      _
    $region79: #{another_dn_forward.1} parent=1 // pred_check_branch
      %3383 = sbr.rel (0) target = $region81
    $region80: #{another_dn_forward.1} parent=1 // pred_region
      %s3385 = ssub.s32 256, 256
      %3386 = vsyncadd [#allocation4], %s3385
      %s3387 = sshll.u32 [#allocation13], 4
      %s3388 = int_to_ptr.vmem [resolvable:$true] %s3387
      %3393 = dma.vmem_to_hbm [thread:$0]  %s3388, 256, %s13, [#allocation4], 128, 128, 8
    $region81: #{another_dn_forward.1} parent=1 // pred_fallthru
      _
    // Predicated region
    $region82: #{another_dn_forward.1} parent=1 // pred_check
      _
    $region83: #{another_dn_forward.1} parent=1 // pred_check_branch
      %3395 = sbr.rel (0) target = $region85
    $region84: #{another_dn_forward.1} parent=1 // pred_region
      %3396 = dma.done [#allocation4], 256
    $region85: #{another_dn_forward.1} parent=1 // pred_fallthru
      _
    %3397 = vsyncpa [#allocation3], 1
    %3398 = vsyncpa [#allocation6], 1
    %3399 = vsyncpa [#allocation9], 1
    %3400 = vsyncpa [#allocation12], 1
    %3401 = vsyncpa [#allocation4], 1

</llo_original>
